<compile_context>
chip_gen: v6e
topology: v6e:2x2x1
jax: 0.10.0
libtpu: 0.0.40
codegen_flags: <defaults>
</compile_context>

<pallas_src>
import functools

import jax
import jax.numpy as jnp
import numpy as np
from jax import lax
from jax.experimental import pallas as pl
from jax.experimental.pallas import tpu as pltpu


# --------------------------------------------------------------------------
# LSTM recurrence kernel.
# grid = (direction, time-chunk); (h, c) live in VMEM scratch and are carried
# across the time-chunk axis (marked "arbitrary"); each grid step runs Tc
# recurrence steps in an unrolled fori_loop.
# --------------------------------------------------------------------------
def _bilstm_kernel(H, Tc, gx_ref, len_ref, whh_ref,
                   out_ref, hn_ref, cn_ref, h_sc, c_sc):
    d = pl.program_id(0)                  # direction: 0 = forward, 1 = backward
    c = pl.program_id(1)                  # chunk index within the direction
    nc = pl.num_programs(1)

    # Time-block this chunk covers (backward walks blocks in reverse).
    cb = jnp.where(d == 0, c, nc - 1 - c)
    t0 = cb * Tc

    @pl.when(c == 0)
    def _():
        h_sc[...] = jnp.zeros_like(h_sc)
        c_sc[...] = jnp.zeros_like(c_sc)

    lens = len_ref[...]                   # (B, 1) int32
    whh = whh_ref[...]                    # (H, 4H)

    def step(j, carry):
        h_prev, c_prev = carry
        # Local time offset inside the block (backward iterates in reverse).
        lt = jnp.where(d == 0, j, Tc - 1 - j)
        t = t0 + lt

        g_x = gx_ref[pl.ds(lt, 1)][0]     # (B, 4H), f32 (x@Wih + b precomputed)
        gates = g_x + jnp.dot(h_prev.astype(whh.dtype), whh,
                              preferred_element_type=jnp.float32)

        # Gates in PyTorch order [i, f, g, o] along the 4H axis.
        i_g = jax.nn.sigmoid(gates[:, 0 * H:1 * H])
        f_g = jax.nn.sigmoid(gates[:, 1 * H:2 * H])
        g_g = jnp.tanh(gates[:, 2 * H:3 * H])
        o_g = jax.nn.sigmoid(gates[:, 3 * H:4 * H])

        c_new = f_g * c_prev + i_g * g_g
        h_new = o_g * jnp.tanh(c_new)

        valid = lens > t                  # (B, 1) packed-sequence mask
        out_ref[pl.ds(lt, 1)] = (
            jnp.where(valid, h_new, 0.0)[None].astype(out_ref.dtype))
        return (jnp.where(valid, h_new, h_prev),
                jnp.where(valid, c_new, c_prev))

    h_fin, c_fin = lax.fori_loop(0, Tc, step, (h_sc[...], c_sc[...]),
                                 unroll=True)
    h_sc[...] = h_fin
    c_sc[...] = c_fin

    # Final states written only once, on the last chunk of each direction.
    @pl.when(c == nc - 1)
    def _():
        hn_ref[...] = h_fin
        cn_ref[...] = c_fin


# --------------------------------------------------------------------------
# Wrapper: parameter reshaping, hoisted input projection, pallas_call.
# --------------------------------------------------------------------------
def rnn_encoder_forward(x, lengths, wih, whh, bih, bhh, wh_proj, wc_proj,
                        *, time_chunk=8, matmul_dtype=jnp.float32):
    """x: (B, T, I) f32; lengths: (B,) int32; weights in PyTorch shapes.

    matmul_dtype=jnp.bfloat16 is recommended on v6e/v7x (f32 accumulation is
    kept), at the cost of looser numerical agreement with an f32 reference.
    """
    B, T, I = x.shape
    H = whh.shape[2]

    Tc = min(time_chunk, T)
    T_pad = pl.cdiv(T, Tc) * Tc
    NC = T_pad // Tc

    x_tm = jnp.transpose(x, (1, 0, 2)).astype(matmul_dtype)       # (T, B, I)
    wih_T = jnp.transpose(wih, (0, 2, 1)).astype(matmul_dtype)    # (2, I, 4H)
    whh_T = jnp.transpose(whh, (0, 2, 1)).astype(matmul_dtype)    # (2, H, 4H)
    bias = (bih + bhh).astype(jnp.float32)                        # (2, 4H)

    # Hoisted input projection: one big matmul over every timestep and both
    # directions, bias folded in.  Only the Whh term stays in the recurrence.
    gx = jnp.einsum('tbi,dih->dtbh', x_tm, wih_T,
                    preferred_element_type=jnp.float32)
    gx = gx + bias[:, None, None, :]                              # (2,T,B,4H)
    if T_pad != T:
        # Padded steps have t >= lengths for every batch element, so the mask
        # leaves state untouched and their outputs are zero.
        gx = jnp.pad(gx, ((0, 0), (0, T_pad - T), (0, 0), (0, 0)))

    lengths_v = lengths.astype(jnp.int32).reshape(B, 1)           # (B, 1)

    kernel = functools.partial(_bilstm_kernel, H, Tc)

    def tblk(d, c):   # time-block index for direction d, chunk c
        return jnp.where(d == 0, c, NC - 1 - c)

    out, hn, cn = pl.pallas_call(
        kernel,
        out_shape=(
            jax.ShapeDtypeStruct((2, T_pad, B, H), jnp.float32),  # per-dir outs
            jax.ShapeDtypeStruct((2, B, H), jnp.float32),         # hn per dir
            jax.ShapeDtypeStruct((2, B, H), jnp.float32),         # cn per dir
        ),
        grid_spec=pltpu.PrefetchScalarGridSpec(
            num_scalar_prefetch=0,
            grid=(2, NC),
            in_specs=[
                pl.BlockSpec((None, Tc, B, 4 * H),
                             lambda d, c: (d, tblk(d, c), 0, 0)),
                pl.BlockSpec((B, 1), lambda d, c: (0, 0)),
                pl.BlockSpec((None, H, 4 * H), lambda d, c: (d, 0, 0)),
            ],
            out_specs=(
                pl.BlockSpec((None, Tc, B, H),
                             lambda d, c: (d, tblk(d, c), 0, 0)),
                pl.BlockSpec((None, B, H), lambda d, c: (d, 0, 0)),
                pl.BlockSpec((None, B, H), lambda d, c: (d, 0, 0)),
            ),
            scratch_shapes=[
                pltpu.VMEM((B, H), jnp.float32),                  # h state
                pltpu.VMEM((B, H), jnp.float32),                  # c state
            ],
        ),
        compiler_params=pltpu.CompilerParams(
            # direction axis is independent -> megacore-parallel on v7x;
            # time-chunk axis carries the recurrence state -> arbitrary.
            dimension_semantics=("parallel", "arbitrary")),
    )(gx, lengths_v, whh_T)

    out = out[:, :T]                                              # drop pad
    # (2, T, B, H) -> (B, T, 2H), matching pad_packed_sequence(batch_first=True)
    hidden_state = jnp.concatenate(
        [jnp.transpose(out[0], (1, 0, 2)), jnp.transpose(out[1], (1, 0, 2))],
        axis=-1)

    hcat = jnp.concatenate([hn[0], hn[1]], axis=-1)               # (B, 2H)
    ccat = jnp.concatenate([cn[0], cn[1]], axis=-1)               # (B, 2H)

    # Tiny (B,2H)x(2H,H) bias-free projections: below Pallas launch + DMA
    # overhead, so a dedicated kernel is a net loss -> plain XLA matmul.
    init_h = jnp.dot(hcat, wh_proj.T.astype(jnp.float32),
                     preferred_element_type=jnp.float32)
    init_c = jnp.dot(ccat, wc_proj.T.astype(jnp.float32),
                     preferred_element_type=jnp.float32)
    return hidden_state, init_h, init_c


# --------------------------------------------------------------------------
# Pure-JAX reference (for correctness check only).
# --------------------------------------------------------------------------
def reference_forward(x, lengths, wih, whh, bih, bhh, wh_proj, wc_proj):
    B, T, I = x.shape
    H = whh.shape[2]

    def run(xs_tm, ts, wih_d, whh_d, b_d):
        def step(carry, inp):
            h, c = carry
            xt, t = inp
            gates = xt @ wih_d.T + h @ whh_d.T + b_d
            i_g = jax.nn.sigmoid(gates[:, :H])
            f_g = jax.nn.sigmoid(gates[:, H:2 * H])
            g_g = jnp.tanh(gates[:, 2 * H:3 * H])
            o_g = jax.nn.sigmoid(gates[:, 3 * H:])
            c_new = f_g * c + i_g * g_g
            h_new = o_g * jnp.tanh(c_new)
            valid = (lengths > t)[:, None]
            return ((jnp.where(valid, h_new, h), jnp.where(valid, c_new, c)),
                    jnp.where(valid, h_new, 0.0))
        init = (jnp.zeros((B, H), jnp.float32), jnp.zeros((B, H), jnp.float32))
        (hf, cf), outs = lax.scan(step, init, (xs_tm, ts))
        return outs, hf, cf

    xs = jnp.transpose(x, (1, 0, 2))
    ts = jnp.arange(T)
    fo, hf, cf = run(xs, ts, wih[0], whh[0], bih[0] + bhh[0])
    bo_r, hb, cb = run(xs[::-1], ts[::-1], wih[1], whh[1], bih[1] + bhh[1])
    bo = bo_r[::-1]
    hidden = jnp.concatenate(
        [jnp.transpose(fo, (1, 0, 2)), jnp.transpose(bo, (1, 0, 2))], axis=-1)
    hcat = jnp.concatenate([hf, hb], axis=-1)
    ccat = jnp.concatenate([cf, cb], axis=-1)
    return hidden, hcat @ wh_proj.T, ccat @ wc_proj.T


if __name__ == "__main__":
    B, T, I, H = 4, 16, 16, 32

    key = jax.random.PRNGKey(0)
    ks = jax.random.split(key, 8)
    bound = 1.0 / np.sqrt(H)
    u = lambda k, shape, b: jax.random.uniform(k, shape, jnp.float32, -b, b)

    # PyTorch nn.LSTM(bidirectional=True) parameter shapes, stacked over dirs.
    wih = u(ks[0], (2, 4 * H, I), bound)
    whh = u(ks[1], (2, 4 * H, H), bound)
    bih = u(ks[2], (2, 4 * H), bound)
    bhh = u(ks[3], (2, 4 * H), bound)
    pbound = 1.0 / np.sqrt(2 * H)
    wh_proj = u(ks[4], (H, 2 * H), pbound)    # h_proj.weight
    wc_proj = u(ks[5], (H, 2 * H), pbound)    # c_proj.weight

    x = jax.random.normal(ks[6], (B, T, I), jnp.float32)
    lengths = jnp.array([11, 16, 3, 7], dtype=jnp.int32)   # max == T, unsorted

    hidden_state, init_h, init_c = rnn_encoder_forward(
        x, lengths, wih, whh, bih, bhh, wh_proj, wc_proj, time_chunk=8)
    jax.block_until_ready((hidden_state, init_h, init_c))

    ref_hidden, ref_h, ref_c = reference_forward(
        x, lengths, wih, whh, bih, bhh, wh_proj, wc_proj)

    np.testing.assert_allclose(np.asarray(hidden_state), np.asarray(ref_hidden),
                               rtol=1e-4, atol=1e-4)
    np.testing.assert_allclose(np.asarray(init_h), np.asarray(ref_h),
                               rtol=1e-4, atol=1e-4)
    np.testing.assert_allclose(np.asarray(init_c), np.asarray(ref_c),
                               rtol=1e-4, atol=1e-4)

    print("KERNEL_OK")
</pallas_src>

<mosaic_0001>
module attributes {stable_mosaic.version = 11 : i64} {
  func.func @_bilstm_kernel(%arg0: i32, %arg1: i32, %arg2: memref<1x8x4x128xf32, #tpu.memory_space<vmem>>, %arg3: memref<4x1xi32, #tpu.memory_space<vmem>>, %arg4: memref<1x32x128xf32, #tpu.memory_space<vmem>>, %arg5: memref<1x8x4x32xf32, #tpu.memory_space<vmem>>, %arg6: memref<1x4x32xf32, #tpu.memory_space<vmem>>, %arg7: memref<1x4x32xf32, #tpu.memory_space<vmem>>, %arg8: memref<4x32xf32, #tpu.memory_space<vmem>>, %arg9: memref<4x32xf32, #tpu.memory_space<vmem>>) attributes {dimension_semantics = [#tpu.dimension_semantics<parallel>, #tpu.dimension_semantics<arbitrary>], iteration_bounds = array<i64: 2, 2>, scalar_prefetch = 0 : i64, scratch_operands = 2 : i64, tpu.core_type = #tpu.core_type<tc>, window_params = [{transform_indices = @transform_0, window_bounds = array<i64: 1, 8, 4, 128>}, {pipeline_mode = #tpu.pipeline_mode<synchronous>, transform_indices = @transform_1, window_bounds = array<i64: 4, 1>}, {transform_indices = @transform_2, window_bounds = array<i64: 1, 32, 128>}, {transform_indices = @transform_3, window_bounds = array<i64: 1, 8, 4, 32>}, {transform_indices = @transform_4, window_bounds = array<i64: 1, 4, 32>}, {transform_indices = @transform_5, window_bounds = array<i64: 1, 4, 32>}]} {
    %c0_i32 = arith.constant 0 : i32
    %0 = arith.cmpi eq, %arg0, %c0_i32 : i32
    %c1_i32 = arith.constant 1 : i32
    %1 = arith.subi %c1_i32, %arg1 : i32
    %2 = arith.select %0, %arg1, %1 : i32
    %c8_i32 = arith.constant 8 : i32
    %3 = arith.muli %2, %c8_i32 : i32
    %c0_i32_0 = arith.constant 0 : i32
    %4 = arith.cmpi eq, %arg1, %c0_i32_0 : i32
    %5 = arith.extui %4 : i1 to i32
    %c0_i32_1 = arith.constant 0 : i32
    %6 = arith.cmpi ne, %5, %c0_i32_1 : i32
    scf.if %6 {
      %cst_122 = arith.constant 0.000000e+00 : f32
      %433 = vector.broadcast %cst_122 : f32 to vector<4x32xf32>
      %c0_123 = arith.constant 0 : index
      %c0_124 = arith.constant 0 : index
      %434 = vector.load %arg8[%c0_123, %c0_124] : memref<4x32xf32, #tpu.memory_space<vmem>>, vector<4x32xf32>
      tpu.vector_store %arg8[%c0_123, %c0_124], %433 {strides = array<i32>} : memref<4x32xf32, #tpu.memory_space<vmem>>, vector<4x32xf32>,
      %cst_125 = arith.constant 0.000000e+00 : f32
      %435 = vector.broadcast %cst_125 : f32 to vector<4x32xf32>
      %c0_126 = arith.constant 0 : index
      %c0_127 = arith.constant 0 : index
      %436 = vector.load %arg9[%c0_126, %c0_127] : memref<4x32xf32, #tpu.memory_space<vmem>>, vector<4x32xf32>
      tpu.vector_store %arg9[%c0_126, %c0_127], %435 {strides = array<i32>} : memref<4x32xf32, #tpu.memory_space<vmem>>, vector<4x32xf32>,
    } else {
    }
    %c0 = arith.constant 0 : index
    %c0_2 = arith.constant 0 : index
    %7 = vector.load %arg3[%c0, %c0_2] : memref<4x1xi32, #tpu.memory_space<vmem>>, vector<4x1xi32>
    %c0_3 = arith.constant 0 : index
    %c0_4 = arith.constant 0 : index
    %c0_5 = arith.constant 0 : index
    %8 = vector.load %arg4[%c0_3, %c0_4, %c0_5] : memref<1x32x128xf32, #tpu.memory_space<vmem>>, vector<1x32x128xf32>
    %9 = vector.shape_cast %8 : vector<1x32x128xf32> to vector<32x128xf32>
    %c0_6 = arith.constant 0 : index
    %c0_7 = arith.constant 0 : index
    %10 = vector.load %arg8[%c0_6, %c0_7] : memref<4x32xf32, #tpu.memory_space<vmem>>, vector<4x32xf32>
    %c0_8 = arith.constant 0 : index
    %c0_9 = arith.constant 0 : index
    %11 = vector.load %arg9[%c0_8, %c0_9] : memref<4x32xf32, #tpu.memory_space<vmem>>, vector<4x32xf32>
    %c0_i32_10 = arith.constant 0 : i32
    %c0_i32_11 = arith.constant 0 : i32
    %12 = arith.cmpi eq, %arg0, %c0_i32_11 : i32
    %c7_i32 = arith.constant 7 : i32
    %13 = arith.subi %c7_i32, %c0_i32_10 : i32
    %14 = arith.select %12, %c0_i32_10, %13 : i32
    %15 = arith.addi %3, %14 : i32
    %c0_12 = arith.constant 0 : index
    %16 = arith.index_cast %14 : i32 to index
    %c0_13 = arith.constant 0 : index
    %c0_14 = arith.constant 0 : index
    %17 = vector.load %arg2[%c0_12, %16, %c0_13, %c0_14] : memref<1x8x4x128xf32, #tpu.memory_space<vmem>>, vector<1x1x4x128xf32>
    %18 = vector.shape_cast %17 : vector<1x1x4x128xf32> to vector<1x4x128xf32>
    %19 = vector.shape_cast %18 : vector<1x4x128xf32> to vector<4x128xf32>
    %cst = arith.constant dense<0.000000e+00> : vector<4x128xf32>
    %20 = tpu.matmul %10, %9, %cst {dimension_numbers = #tpu.dot_dimension_numbers<[1], [0], [0], [1], [0, 0, 1, 1], [], []>} : vector<4x32xf32>, vector<32x128xf32>, vector<4x128xf32> -> vector<4x128xf32>
    %21 = arith.addf %19, %20 : vector<4x128xf32>
    %22 = vector.extract_strided_slice %21 {offsets = [0, 0], sizes = [4, 32], strides = [1, 1]} : vector<4x128xf32> to vector<4x32xf32>
    %23 = arith.negf %22 : vector<4x32xf32>
    %24 = math.exp %23 : vector<4x32xf32>
    %cst_15 = arith.constant 1.000000e+00 : f32
    %25 = vector.broadcast %cst_15 : f32 to vector<4x32xf32>
    %26 = arith.addf %25, %24 : vector<4x32xf32>
    %27 = arith.divf %25, %26 : vector<4x32xf32>
    %28 = vector.extract_strided_slice %21 {offsets = [0, 32], sizes = [4, 32], strides = [1, 1]} : vector<4x128xf32> to vector<4x32xf32>
    %29 = arith.negf %28 : vector<4x32xf32>
    %30 = math.exp %29 : vector<4x32xf32>
    %cst_16 = arith.constant 1.000000e+00 : f32
    %31 = vector.broadcast %cst_16 : f32 to vector<4x32xf32>
    %32 = arith.addf %31, %30 : vector<4x32xf32>
    %33 = arith.divf %31, %32 : vector<4x32xf32>
    %34 = vector.extract_strided_slice %21 {offsets = [0, 64], sizes = [4, 32], strides = [1, 1]} : vector<4x128xf32> to vector<4x32xf32>
    %35 = math.tanh %34 : vector<4x32xf32>
    %36 = vector.extract_strided_slice %21 {offsets = [0, 96], sizes = [4, 32], strides = [1, 1]} : vector<4x128xf32> to vector<4x32xf32>
    %37 = arith.negf %36 : vector<4x32xf32>
    %38 = math.exp %37 : vector<4x32xf32>
    %cst_17 = arith.constant 1.000000e+00 : f32
    %39 = vector.broadcast %cst_17 : f32 to vector<4x32xf32>
    %40 = arith.addf %39, %38 : vector<4x32xf32>
    %41 = arith.divf %39, %40 : vector<4x32xf32>
    %42 = arith.mulf %33, %11 : vector<4x32xf32>
    %43 = arith.mulf %27, %35 : vector<4x32xf32>
    %44 = arith.addf %42, %43 : vector<4x32xf32>
    %45 = math.tanh %44 : vector<4x32xf32>
    %46 = arith.mulf %41, %45 : vector<4x32xf32>
    %47 = vector.broadcast %15 : i32 to vector<4x1xi32>
    %48 = arith.cmpi sgt, %7, %47 : vector<4x1xi32>
    %cst_18 = arith.constant 0.000000e+00 : f32
    %49 = vector.shape_cast %48 : vector<4x1xi1> to vector<4x1xi1>
    %50 = vector.broadcast %49 : vector<4x1xi1> to vector<4x32xi1>
    %51 = vector.broadcast %cst_18 : f32 to vector<4x32xf32>
    %52 = arith.select %50, %46, %51 : vector<4x32xi1>, vector<4x32xf32>
    %53 = vector.shape_cast %52 : vector<4x32xf32> to vector<1x4x32xf32>
    %c0_19 = arith.constant 0 : index
    %54 = arith.index_cast %14 : i32 to index
    %c0_20 = arith.constant 0 : index
    %c0_21 = arith.constant 0 : index
    %55 = vector.load %arg5[%c0_19, %54, %c0_20, %c0_21] : memref<1x8x4x32xf32, #tpu.memory_space<vmem>>, vector<1x1x4x32xf32>
    %56 = vector.shape_cast %55 : vector<1x1x4x32xf32> to vector<1x4x32xf32>
    %57 = vector.shape_cast %53 : vector<1x4x32xf32> to vector<1x1x4x32xf32>
    tpu.vector_store %arg5[%c0_19, %54, %c0_20, %c0_21], %57 {strides = array<i32>} : memref<1x8x4x32xf32, #tpu.memory_space<vmem>>, vector<1x1x4x32xf32>,
    %58 = vector.shape_cast %48 : vector<4x1xi1> to vector<4x1xi1>
    %59 = vector.broadcast %58 : vector<4x1xi1> to vector<4x32xi1>
    %60 = arith.select %59, %46, %10 : vector<4x32xi1>, vector<4x32xf32>
    %61 = vector.shape_cast %48 : vector<4x1xi1> to vector<4x1xi1>
    %62 = vector.broadcast %61 : vector<4x1xi1> to vector<4x32xi1>
    %63 = arith.select %62, %44, %11 : vector<4x32xi1>, vector<4x32xf32>
    %c1_i32_22 = arith.constant 1 : i32
    %c0_i32_23 = arith.constant 0 : i32
    %64 = arith.cmpi eq, %arg0, %c0_i32_23 : i32
    %c7_i32_24 = arith.constant 7 : i32
    %65 = arith.subi %c7_i32_24, %c1_i32_22 : i32
    %66 = arith.select %64, %c1_i32_22, %65 : i32
    %67 = arith.addi %3, %66 : i32
    %c0_25 = arith.constant 0 : index
    %68 = arith.index_cast %66 : i32 to index
    %c0_26 = arith.constant 0 : index
    %c0_27 = arith.constant 0 : index
    %69 = vector.load %arg2[%c0_25, %68, %c0_26, %c0_27] : memref<1x8x4x128xf32, #tpu.memory_space<vmem>>, vector<1x1x4x128xf32>
    %70 = vector.shape_cast %69 : vector<1x1x4x128xf32> to vector<1x4x128xf32>
    %71 = vector.shape_cast %70 : vector<1x4x128xf32> to vector<4x128xf32>
    %cst_28 = arith.constant dense<0.000000e+00> : vector<4x128xf32>
    %72 = tpu.matmul %60, %9, %cst_28 {dimension_numbers = #tpu.dot_dimension_numbers<[1], [0], [0], [1], [0, 0, 1, 1], [], []>} : vector<4x32xf32>, vector<32x128xf32>, vector<4x128xf32> -> vector<4x128xf32>
    %73 = arith.addf %71, %72 : vector<4x128xf32>
    %74 = vector.extract_strided_slice %73 {offsets = [0, 0], sizes = [4, 32], strides = [1, 1]} : vector<4x128xf32> to vector<4x32xf32>
    %75 = arith.negf %74 : vector<4x32xf32>
    %76 = math.exp %75 : vector<4x32xf32>
    %cst_29 = arith.constant 1.000000e+00 : f32
    %77 = vector.broadcast %cst_29 : f32 to vector<4x32xf32>
    %78 = arith.addf %77, %76 : vector<4x32xf32>
    %79 = arith.divf %77, %78 : vector<4x32xf32>
    %80 = vector.extract_strided_slice %73 {offsets = [0, 32], sizes = [4, 32], strides = [1, 1]} : vector<4x128xf32> to vector<4x32xf32>
    %81 = arith.negf %80 : vector<4x32xf32>
    %82 = math.exp %81 : vector<4x32xf32>
    %cst_30 = arith.constant 1.000000e+00 : f32
    %83 = vector.broadcast %cst_30 : f32 to vector<4x32xf32>
    %84 = arith.addf %83, %82 : vector<4x32xf32>
    %85 = arith.divf %83, %84 : vector<4x32xf32>
    %86 = vector.extract_strided_slice %73 {offsets = [0, 64], sizes = [4, 32], strides = [1, 1]} : vector<4x128xf32> to vector<4x32xf32>
    %87 = math.tanh %86 : vector<4x32xf32>
    %88 = vector.extract_strided_slice %73 {offsets = [0, 96], sizes = [4, 32], strides = [1, 1]} : vector<4x128xf32> to vector<4x32xf32>
    %89 = arith.negf %88 : vector<4x32xf32>
    %90 = math.exp %89 : vector<4x32xf32>
    %cst_31 = arith.constant 1.000000e+00 : f32
    %91 = vector.broadcast %cst_31 : f32 to vector<4x32xf32>
    %92 = arith.addf %91, %90 : vector<4x32xf32>
    %93 = arith.divf %91, %92 : vector<4x32xf32>
    %94 = arith.mulf %85, %63 : vector<4x32xf32>
    %95 = arith.mulf %79, %87 : vector<4x32xf32>
    %96 = arith.addf %94, %95 : vector<4x32xf32>
    %97 = math.tanh %96 : vector<4x32xf32>
    %98 = arith.mulf %93, %97 : vector<4x32xf32>
    %99 = vector.broadcast %67 : i32 to vector<4x1xi32>
    %100 = arith.cmpi sgt, %7, %99 : vector<4x1xi32>
    %cst_32 = arith.constant 0.000000e+00 : f32
    %101 = vector.shape_cast %100 : vector<4x1xi1> to vector<4x1xi1>
    %102 = vector.broadcast %101 : vector<4x1xi1> to vector<4x32xi1>
    %103 = vector.broadcast %cst_32 : f32 to vector<4x32xf32>
    %104 = arith.select %102, %98, %103 : vector<4x32xi1>, vector<4x32xf32>
    %105 = vector.shape_cast %104 : vector<4x32xf32> to vector<1x4x32xf32>
    %c0_33 = arith.constant 0 : index
    %106 = arith.index_cast %66 : i32 to index
    %c0_34 = arith.constant 0 : index
    %c0_35 = arith.constant 0 : index
    %107 = vector.load %arg5[%c0_33, %106, %c0_34, %c0_35] : memref<1x8x4x32xf32, #tpu.memory_space<vmem>>, vector<1x1x4x32xf32>
    %108 = vector.shape_cast %107 : vector<1x1x4x32xf32> to vector<1x4x32xf32>
    %109 = vector.shape_cast %105 : vector<1x4x32xf32> to vector<1x1x4x32xf32>
    tpu.vector_store %arg5[%c0_33, %106, %c0_34, %c0_35], %109 {strides = array<i32>} : memref<1x8x4x32xf32, #tpu.memory_space<vmem>>, vector<1x1x4x32xf32>,
    %110 = vector.shape_cast %100 : vector<4x1xi1> to vector<4x1xi1>
    %111 = vector.broadcast %110 : vector<4x1xi1> to vector<4x32xi1>
    %112 = arith.select %111, %98, %60 : vector<4x32xi1>, vector<4x32xf32>
    %113 = vector.shape_cast %100 : vector<4x1xi1> to vector<4x1xi1>
    %114 = vector.broadcast %113 : vector<4x1xi1> to vector<4x32xi1>
    %115 = arith.select %114, %96, %63 : vector<4x32xi1>, vector<4x32xf32>
    %c2_i32 = arith.constant 2 : i32
    %c0_i32_36 = arith.constant 0 : i32
    %116 = arith.cmpi eq, %arg0, %c0_i32_36 : i32
    %c7_i32_37 = arith.constant 7 : i32
    %117 = arith.subi %c7_i32_37, %c2_i32 : i32
    %118 = arith.select %116, %c2_i32, %117 : i32
    %119 = arith.addi %3, %118 : i32
    %c0_38 = arith.constant 0 : index
    %120 = arith.index_cast %118 : i32 to index
    %c0_39 = arith.constant 0 : index
    %c0_40 = arith.constant 0 : index
    %121 = vector.load %arg2[%c0_38, %120, %c0_39, %c0_40] : memref<1x8x4x128xf32, #tpu.memory_space<vmem>>, vector<1x1x4x128xf32>
    %122 = vector.shape_cast %121 : vector<1x1x4x128xf32> to vector<1x4x128xf32>
    %123 = vector.shape_cast %122 : vector<1x4x128xf32> to vector<4x128xf32>
    %cst_41 = arith.constant dense<0.000000e+00> : vector<4x128xf32>
    %124 = tpu.matmul %112, %9, %cst_41 {dimension_numbers = #tpu.dot_dimension_numbers<[1], [0], [0], [1], [0, 0, 1, 1], [], []>} : vector<4x32xf32>, vector<32x128xf32>, vector<4x128xf32> -> vector<4x128xf32>
    %125 = arith.addf %123, %124 : vector<4x128xf32>
    %126 = vector.extract_strided_slice %125 {offsets = [0, 0], sizes = [4, 32], strides = [1, 1]} : vector<4x128xf32> to vector<4x32xf32>
    %127 = arith.negf %126 : vector<4x32xf32>
    %128 = math.exp %127 : vector<4x32xf32>
    %cst_42 = arith.constant 1.000000e+00 : f32
    %129 = vector.broadcast %cst_42 : f32 to vector<4x32xf32>
    %130 = arith.addf %129, %128 : vector<4x32xf32>
    %131 = arith.divf %129, %130 : vector<4x32xf32>
    %132 = vector.extract_strided_slice %125 {offsets = [0, 32], sizes = [4, 32], strides = [1, 1]} : vector<4x128xf32> to vector<4x32xf32>
    %133 = arith.negf %132 : vector<4x32xf32>
    %134 = math.exp %133 : vector<4x32xf32>
    %cst_43 = arith.constant 1.000000e+00 : f32
    %135 = vector.broadcast %cst_43 : f32 to vector<4x32xf32>
    %136 = arith.addf %135, %134 : vector<4x32xf32>
    %137 = arith.divf %135, %136 : vector<4x32xf32>
    %138 = vector.extract_strided_slice %125 {offsets = [0, 64], sizes = [4, 32], strides = [1, 1]} : vector<4x128xf32> to vector<4x32xf32>
    %139 = math.tanh %138 : vector<4x32xf32>
    %140 = vector.extract_strided_slice %125 {offsets = [0, 96], sizes = [4, 32], strides = [1, 1]} : vector<4x128xf32> to vector<4x32xf32>
    %141 = arith.negf %140 : vector<4x32xf32>
    %142 = math.exp %141 : vector<4x32xf32>
    %cst_44 = arith.constant 1.000000e+00 : f32
    %143 = vector.broadcast %cst_44 : f32 to vector<4x32xf32>
    %144 = arith.addf %143, %142 : vector<4x32xf32>
    %145 = arith.divf %143, %144 : vector<4x32xf32>
    %146 = arith.mulf %137, %115 : vector<4x32xf32>
    %147 = arith.mulf %131, %139 : vector<4x32xf32>
    %148 = arith.addf %146, %147 : vector<4x32xf32>
    %149 = math.tanh %148 : vector<4x32xf32>
    %150 = arith.mulf %145, %149 : vector<4x32xf32>
    %151 = vector.broadcast %119 : i32 to vector<4x1xi32>
    %152 = arith.cmpi sgt, %7, %151 : vector<4x1xi32>
    %cst_45 = arith.constant 0.000000e+00 : f32
    %153 = vector.shape_cast %152 : vector<4x1xi1> to vector<4x1xi1>
    %154 = vector.broadcast %153 : vector<4x1xi1> to vector<4x32xi1>
    %155 = vector.broadcast %cst_45 : f32 to vector<4x32xf32>
    %156 = arith.select %154, %150, %155 : vector<4x32xi1>, vector<4x32xf32>
    %157 = vector.shape_cast %156 : vector<4x32xf32> to vector<1x4x32xf32>
    %c0_46 = arith.constant 0 : index
    %158 = arith.index_cast %118 : i32 to index
    %c0_47 = arith.constant 0 : index
    %c0_48 = arith.constant 0 : index
    %159 = vector.load %arg5[%c0_46, %158, %c0_47, %c0_48] : memref<1x8x4x32xf32, #tpu.memory_space<vmem>>, vector<1x1x4x32xf32>
    %160 = vector.shape_cast %159 : vector<1x1x4x32xf32> to vector<1x4x32xf32>
    %161 = vector.shape_cast %157 : vector<1x4x32xf32> to vector<1x1x4x32xf32>
    tpu.vector_store %arg5[%c0_46, %158, %c0_47, %c0_48], %161 {strides = array<i32>} : memref<1x8x4x32xf32, #tpu.memory_space<vmem>>, vector<1x1x4x32xf32>,
    %162 = vector.shape_cast %152 : vector<4x1xi1> to vector<4x1xi1>
    %163 = vector.broadcast %162 : vector<4x1xi1> to vector<4x32xi1>
    %164 = arith.select %163, %150, %112 : vector<4x32xi1>, vector<4x32xf32>
    %165 = vector.shape_cast %152 : vector<4x1xi1> to vector<4x1xi1>
    %166 = vector.broadcast %165 : vector<4x1xi1> to vector<4x32xi1>
    %167 = arith.select %166, %148, %115 : vector<4x32xi1>, vector<4x32xf32>
    %c3_i32 = arith.constant 3 : i32
    %c0_i32_49 = arith.constant 0 : i32
    %168 = arith.cmpi eq, %arg0, %c0_i32_49 : i32
    %c7_i32_50 = arith.constant 7 : i32
    %169 = arith.subi %c7_i32_50, %c3_i32 : i32
    %170 = arith.select %168, %c3_i32, %169 : i32
    %171 = arith.addi %3, %170 : i32
    %c0_51 = arith.constant 0 : index
    %172 = arith.index_cast %170 : i32 to index
    %c0_52 = arith.constant 0 : index
    %c0_53 = arith.constant 0 : index
    %173 = vector.load %arg2[%c0_51, %172, %c0_52, %c0_53] : memref<1x8x4x128xf32, #tpu.memory_space<vmem>>, vector<1x1x4x128xf32>
    %174 = vector.shape_cast %173 : vector<1x1x4x128xf32> to vector<1x4x128xf32>
    %175 = vector.shape_cast %174 : vector<1x4x128xf32> to vector<4x128xf32>
    %cst_54 = arith.constant dense<0.000000e+00> : vector<4x128xf32>
    %176 = tpu.matmul %164, %9, %cst_54 {dimension_numbers = #tpu.dot_dimension_numbers<[1], [0], [0], [1], [0, 0, 1, 1], [], []>} : vector<4x32xf32>, vector<32x128xf32>, vector<4x128xf32> -> vector<4x128xf32>
    %177 = arith.addf %175, %176 : vector<4x128xf32>
    %178 = vector.extract_strided_slice %177 {offsets = [0, 0], sizes = [4, 32], strides = [1, 1]} : vector<4x128xf32> to vector<4x32xf32>
    %179 = arith.negf %178 : vector<4x32xf32>
    %180 = math.exp %179 : vector<4x32xf32>
    %cst_55 = arith.constant 1.000000e+00 : f32
    %181 = vector.broadcast %cst_55 : f32 to vector<4x32xf32>
    %182 = arith.addf %181, %180 : vector<4x32xf32>
    %183 = arith.divf %181, %182 : vector<4x32xf32>
    %184 = vector.extract_strided_slice %177 {offsets = [0, 32], sizes = [4, 32], strides = [1, 1]} : vector<4x128xf32> to vector<4x32xf32>
    %185 = arith.negf %184 : vector<4x32xf32>
    %186 = math.exp %185 : vector<4x32xf32>
    %cst_56 = arith.constant 1.000000e+00 : f32
    %187 = vector.broadcast %cst_56 : f32 to vector<4x32xf32>
    %188 = arith.addf %187, %186 : vector<4x32xf32>
    %189 = arith.divf %187, %188 : vector<4x32xf32>
    %190 = vector.extract_strided_slice %177 {offsets = [0, 64], sizes = [4, 32], strides = [1, 1]} : vector<4x128xf32> to vector<4x32xf32>
    %191 = math.tanh %190 : vector<4x32xf32>
    %192 = vector.extract_strided_slice %177 {offsets = [0, 96], sizes = [4, 32], strides = [1, 1]} : vector<4x128xf32> to vector<4x32xf32>
    %193 = arith.negf %192 : vector<4x32xf32>
    %194 = math.exp %193 : vector<4x32xf32>
    %cst_57 = arith.constant 1.000000e+00 : f32
    %195 = vector.broadcast %cst_57 : f32 to vector<4x32xf32>
    %196 = arith.addf %195, %194 : vector<4x32xf32>
    %197 = arith.divf %195, %196 : vector<4x32xf32>
    %198 = arith.mulf %189, %167 : vector<4x32xf32>
    %199 = arith.mulf %183, %191 : vector<4x32xf32>
    %200 = arith.addf %198, %199 : vector<4x32xf32>
    %201 = math.tanh %200 : vector<4x32xf32>
    %202 = arith.mulf %197, %201 : vector<4x32xf32>
    %203 = vector.broadcast %171 : i32 to vector<4x1xi32>
    %204 = arith.cmpi sgt, %7, %203 : vector<4x1xi32>
    %cst_58 = arith.constant 0.000000e+00 : f32
    %205 = vector.shape_cast %204 : vector<4x1xi1> to vector<4x1xi1>
    %206 = vector.broadcast %205 : vector<4x1xi1> to vector<4x32xi1>
    %207 = vector.broadcast %cst_58 : f32 to vector<4x32xf32>
    %208 = arith.select %206, %202, %207 : vector<4x32xi1>, vector<4x32xf32>
    %209 = vector.shape_cast %208 : vector<4x32xf32> to vector<1x4x32xf32>
    %c0_59 = arith.constant 0 : index
    %210 = arith.index_cast %170 : i32 to index
    %c0_60 = arith.constant 0 : index
    %c0_61 = arith.constant 0 : index
    %211 = vector.load %arg5[%c0_59, %210, %c0_60, %c0_61] : memref<1x8x4x32xf32, #tpu.memory_space<vmem>>, vector<1x1x4x32xf32>
    %212 = vector.shape_cast %211 : vector<1x1x4x32xf32> to vector<1x4x32xf32>
    %213 = vector.shape_cast %209 : vector<1x4x32xf32> to vector<1x1x4x32xf32>
    tpu.vector_store %arg5[%c0_59, %210, %c0_60, %c0_61], %213 {strides = array<i32>} : memref<1x8x4x32xf32, #tpu.memory_space<vmem>>, vector<1x1x4x32xf32>,
    %214 = vector.shape_cast %204 : vector<4x1xi1> to vector<4x1xi1>
    %215 = vector.broadcast %214 : vector<4x1xi1> to vector<4x32xi1>
    %216 = arith.select %215, %202, %164 : vector<4x32xi1>, vector<4x32xf32>
    %217 = vector.shape_cast %204 : vector<4x1xi1> to vector<4x1xi1>
    %218 = vector.broadcast %217 : vector<4x1xi1> to vector<4x32xi1>
    %219 = arith.select %218, %200, %167 : vector<4x32xi1>, vector<4x32xf32>
    %c4_i32 = arith.constant 4 : i32
    %c0_i32_62 = arith.constant 0 : i32
    %220 = arith.cmpi eq, %arg0, %c0_i32_62 : i32
    %c7_i32_63 = arith.constant 7 : i32
    %221 = arith.subi %c7_i32_63, %c4_i32 : i32
    %222 = arith.select %220, %c4_i32, %221 : i32
    %223 = arith.addi %3, %222 : i32
    %c0_64 = arith.constant 0 : index
    %224 = arith.index_cast %222 : i32 to index
    %c0_65 = arith.constant 0 : index
    %c0_66 = arith.constant 0 : index
    %225 = vector.load %arg2[%c0_64, %224, %c0_65, %c0_66] : memref<1x8x4x128xf32, #tpu.memory_space<vmem>>, vector<1x1x4x128xf32>
    %226 = vector.shape_cast %225 : vector<1x1x4x128xf32> to vector<1x4x128xf32>
    %227 = vector.shape_cast %226 : vector<1x4x128xf32> to vector<4x128xf32>
    %cst_67 = arith.constant dense<0.000000e+00> : vector<4x128xf32>
    %228 = tpu.matmul %216, %9, %cst_67 {dimension_numbers = #tpu.dot_dimension_numbers<[1], [0], [0], [1], [0, 0, 1, 1], [], []>} : vector<4x32xf32>, vector<32x128xf32>, vector<4x128xf32> -> vector<4x128xf32>
    %229 = arith.addf %227, %228 : vector<4x128xf32>
    %230 = vector.extract_strided_slice %229 {offsets = [0, 0], sizes = [4, 32], strides = [1, 1]} : vector<4x128xf32> to vector<4x32xf32>
    %231 = arith.negf %230 : vector<4x32xf32>
    %232 = math.exp %231 : vector<4x32xf32>
    %cst_68 = arith.constant 1.000000e+00 : f32
    %233 = vector.broadcast %cst_68 : f32 to vector<4x32xf32>
    %234 = arith.addf %233, %232 : vector<4x32xf32>
    %235 = arith.divf %233, %234 : vector<4x32xf32>
    %236 = vector.extract_strided_slice %229 {offsets = [0, 32], sizes = [4, 32], strides = [1, 1]} : vector<4x128xf32> to vector<4x32xf32>
    %237 = arith.negf %236 : vector<4x32xf32>
    %238 = math.exp %237 : vector<4x32xf32>
    %cst_69 = arith.constant 1.000000e+00 : f32
    %239 = vector.broadcast %cst_69 : f32 to vector<4x32xf32>
    %240 = arith.addf %239, %238 : vector<4x32xf32>
    %241 = arith.divf %239, %240 : vector<4x32xf32>
    %242 = vector.extract_strided_slice %229 {offsets = [0, 64], sizes = [4, 32], strides = [1, 1]} : vector<4x128xf32> to vector<4x32xf32>
    %243 = math.tanh %242 : vector<4x32xf32>
    %244 = vector.extract_strided_slice %229 {offsets = [0, 96], sizes = [4, 32], strides = [1, 1]} : vector<4x128xf32> to vector<4x32xf32>
    %245 = arith.negf %244 : vector<4x32xf32>
    %246 = math.exp %245 : vector<4x32xf32>
    %cst_70 = arith.constant 1.000000e+00 : f32
    %247 = vector.broadcast %cst_70 : f32 to vector<4x32xf32>
    %248 = arith.addf %247, %246 : vector<4x32xf32>
    %249 = arith.divf %247, %248 : vector<4x32xf32>
    %250 = arith.mulf %241, %219 : vector<4x32xf32>
    %251 = arith.mulf %235, %243 : vector<4x32xf32>
    %252 = arith.addf %250, %251 : vector<4x32xf32>
    %253 = math.tanh %252 : vector<4x32xf32>
    %254 = arith.mulf %249, %253 : vector<4x32xf32>
    %255 = vector.broadcast %223 : i32 to vector<4x1xi32>
    %256 = arith.cmpi sgt, %7, %255 : vector<4x1xi32>
    %cst_71 = arith.constant 0.000000e+00 : f32
    %257 = vector.shape_cast %256 : vector<4x1xi1> to vector<4x1xi1>
    %258 = vector.broadcast %257 : vector<4x1xi1> to vector<4x32xi1>
    %259 = vector.broadcast %cst_71 : f32 to vector<4x32xf32>
    %260 = arith.select %258, %254, %259 : vector<4x32xi1>, vector<4x32xf32>
    %261 = vector.shape_cast %260 : vector<4x32xf32> to vector<1x4x32xf32>
    %c0_72 = arith.constant 0 : index
    %262 = arith.index_cast %222 : i32 to index
    %c0_73 = arith.constant 0 : index
    %c0_74 = arith.constant 0 : index
    %263 = vector.load %arg5[%c0_72, %262, %c0_73, %c0_74] : memref<1x8x4x32xf32, #tpu.memory_space<vmem>>, vector<1x1x4x32xf32>
    %264 = vector.shape_cast %263 : vector<1x1x4x32xf32> to vector<1x4x32xf32>
    %265 = vector.shape_cast %261 : vector<1x4x32xf32> to vector<1x1x4x32xf32>
    tpu.vector_store %arg5[%c0_72, %262, %c0_73, %c0_74], %265 {strides = array<i32>} : memref<1x8x4x32xf32, #tpu.memory_space<vmem>>, vector<1x1x4x32xf32>,
    %266 = vector.shape_cast %256 : vector<4x1xi1> to vector<4x1xi1>
    %267 = vector.broadcast %266 : vector<4x1xi1> to vector<4x32xi1>
    %268 = arith.select %267, %254, %216 : vector<4x32xi1>, vector<4x32xf32>
    %269 = vector.shape_cast %256 : vector<4x1xi1> to vector<4x1xi1>
    %270 = vector.broadcast %269 : vector<4x1xi1> to vector<4x32xi1>
    %271 = arith.select %270, %252, %219 : vector<4x32xi1>, vector<4x32xf32>
    %c5_i32 = arith.constant 5 : i32
    %c0_i32_75 = arith.constant 0 : i32
    %272 = arith.cmpi eq, %arg0, %c0_i32_75 : i32
    %c7_i32_76 = arith.constant 7 : i32
    %273 = arith.subi %c7_i32_76, %c5_i32 : i32
    %274 = arith.select %272, %c5_i32, %273 : i32
    %275 = arith.addi %3, %274 : i32
    %c0_77 = arith.constant 0 : index
    %276 = arith.index_cast %274 : i32 to index
    %c0_78 = arith.constant 0 : index
    %c0_79 = arith.constant 0 : index
    %277 = vector.load %arg2[%c0_77, %276, %c0_78, %c0_79] : memref<1x8x4x128xf32, #tpu.memory_space<vmem>>, vector<1x1x4x128xf32>
    %278 = vector.shape_cast %277 : vector<1x1x4x128xf32> to vector<1x4x128xf32>
    %279 = vector.shape_cast %278 : vector<1x4x128xf32> to vector<4x128xf32>
    %cst_80 = arith.constant dense<0.000000e+00> : vector<4x128xf32>
    %280 = tpu.matmul %268, %9, %cst_80 {dimension_numbers = #tpu.dot_dimension_numbers<[1], [0], [0], [1], [0, 0, 1, 1], [], []>} : vector<4x32xf32>, vector<32x128xf32>, vector<4x128xf32> -> vector<4x128xf32>
    %281 = arith.addf %279, %280 : vector<4x128xf32>
    %282 = vector.extract_strided_slice %281 {offsets = [0, 0], sizes = [4, 32], strides = [1, 1]} : vector<4x128xf32> to vector<4x32xf32>
    %283 = arith.negf %282 : vector<4x32xf32>
    %284 = math.exp %283 : vector<4x32xf32>
    %cst_81 = arith.constant 1.000000e+00 : f32
    %285 = vector.broadcast %cst_81 : f32 to vector<4x32xf32>
    %286 = arith.addf %285, %284 : vector<4x32xf32>
    %287 = arith.divf %285, %286 : vector<4x32xf32>
    %288 = vector.extract_strided_slice %281 {offsets = [0, 32], sizes = [4, 32], strides = [1, 1]} : vector<4x128xf32> to vector<4x32xf32>
    %289 = arith.negf %288 : vector<4x32xf32>
    %290 = math.exp %289 : vector<4x32xf32>
    %cst_82 = arith.constant 1.000000e+00 : f32
    %291 = vector.broadcast %cst_82 : f32 to vector<4x32xf32>
    %292 = arith.addf %291, %290 : vector<4x32xf32>
    %293 = arith.divf %291, %292 : vector<4x32xf32>
    %294 = vector.extract_strided_slice %281 {offsets = [0, 64], sizes = [4, 32], strides = [1, 1]} : vector<4x128xf32> to vector<4x32xf32>
    %295 = math.tanh %294 : vector<4x32xf32>
    %296 = vector.extract_strided_slice %281 {offsets = [0, 96], sizes = [4, 32], strides = [1, 1]} : vector<4x128xf32> to vector<4x32xf32>
    %297 = arith.negf %296 : vector<4x32xf32>
    %298 = math.exp %297 : vector<4x32xf32>
    %cst_83 = arith.constant 1.000000e+00 : f32
    %299 = vector.broadcast %cst_83 : f32 to vector<4x32xf32>
    %300 = arith.addf %299, %298 : vector<4x32xf32>
    %301 = arith.divf %299, %300 : vector<4x32xf32>
    %302 = arith.mulf %293, %271 : vector<4x32xf32>
    %303 = arith.mulf %287, %295 : vector<4x32xf32>
    %304 = arith.addf %302, %303 : vector<4x32xf32>
    %305 = math.tanh %304 : vector<4x32xf32>
    %306 = arith.mulf %301, %305 : vector<4x32xf32>
    %307 = vector.broadcast %275 : i32 to vector<4x1xi32>
    %308 = arith.cmpi sgt, %7, %307 : vector<4x1xi32>
    %cst_84 = arith.constant 0.000000e+00 : f32
    %309 = vector.shape_cast %308 : vector<4x1xi1> to vector<4x1xi1>
    %310 = vector.broadcast %309 : vector<4x1xi1> to vector<4x32xi1>
    %311 = vector.broadcast %cst_84 : f32 to vector<4x32xf32>
    %312 = arith.select %310, %306, %311 : vector<4x32xi1>, vector<4x32xf32>
    %313 = vector.shape_cast %312 : vector<4x32xf32> to vector<1x4x32xf32>
    %c0_85 = arith.constant 0 : index
    %314 = arith.index_cast %274 : i32 to index
    %c0_86 = arith.constant 0 : index
    %c0_87 = arith.constant 0 : index
    %315 = vector.load %arg5[%c0_85, %314, %c0_86, %c0_87] : memref<1x8x4x32xf32, #tpu.memory_space<vmem>>, vector<1x1x4x32xf32>
    %316 = vector.shape_cast %315 : vector<1x1x4x32xf32> to vector<1x4x32xf32>
    %317 = vector.shape_cast %313 : vector<1x4x32xf32> to vector<1x1x4x32xf32>
    tpu.vector_store %arg5[%c0_85, %314, %c0_86, %c0_87], %317 {strides = array<i32>} : memref<1x8x4x32xf32, #tpu.memory_space<vmem>>, vector<1x1x4x32xf32>,
    %318 = vector.shape_cast %308 : vector<4x1xi1> to vector<4x1xi1>
    %319 = vector.broadcast %318 : vector<4x1xi1> to vector<4x32xi1>
    %320 = arith.select %319, %306, %268 : vector<4x32xi1>, vector<4x32xf32>
    %321 = vector.shape_cast %308 : vector<4x1xi1> to vector<4x1xi1>
    %322 = vector.broadcast %321 : vector<4x1xi1> to vector<4x32xi1>
    %323 = arith.select %322, %304, %271 : vector<4x32xi1>, vector<4x32xf32>
    %c6_i32 = arith.constant 6 : i32
    %c0_i32_88 = arith.constant 0 : i32
    %324 = arith.cmpi eq, %arg0, %c0_i32_88 : i32
    %c7_i32_89 = arith.constant 7 : i32
    %325 = arith.subi %c7_i32_89, %c6_i32 : i32
    %326 = arith.select %324, %c6_i32, %325 : i32
    %327 = arith.addi %3, %326 : i32
    %c0_90 = arith.constant 0 : index
    %328 = arith.index_cast %326 : i32 to index
    %c0_91 = arith.constant 0 : index
    %c0_92 = arith.constant 0 : index
    %329 = vector.load %arg2[%c0_90, %328, %c0_91, %c0_92] : memref<1x8x4x128xf32, #tpu.memory_space<vmem>>, vector<1x1x4x128xf32>
    %330 = vector.shape_cast %329 : vector<1x1x4x128xf32> to vector<1x4x128xf32>
    %331 = vector.shape_cast %330 : vector<1x4x128xf32> to vector<4x128xf32>
    %cst_93 = arith.constant dense<0.000000e+00> : vector<4x128xf32>
    %332 = tpu.matmul %320, %9, %cst_93 {dimension_numbers = #tpu.dot_dimension_numbers<[1], [0], [0], [1], [0, 0, 1, 1], [], []>} : vector<4x32xf32>, vector<32x128xf32>, vector<4x128xf32> -> vector<4x128xf32>
    %333 = arith.addf %331, %332 : vector<4x128xf32>
    %334 = vector.extract_strided_slice %333 {offsets = [0, 0], sizes = [4, 32], strides = [1, 1]} : vector<4x128xf32> to vector<4x32xf32>
    %335 = arith.negf %334 : vector<4x32xf32>
    %336 = math.exp %335 : vector<4x32xf32>
    %cst_94 = arith.constant 1.000000e+00 : f32
    %337 = vector.broadcast %cst_94 : f32 to vector<4x32xf32>
    %338 = arith.addf %337, %336 : vector<4x32xf32>
    %339 = arith.divf %337, %338 : vector<4x32xf32>
    %340 = vector.extract_strided_slice %333 {offsets = [0, 32], sizes = [4, 32], strides = [1, 1]} : vector<4x128xf32> to vector<4x32xf32>
    %341 = arith.negf %340 : vector<4x32xf32>
    %342 = math.exp %341 : vector<4x32xf32>
    %cst_95 = arith.constant 1.000000e+00 : f32
    %343 = vector.broadcast %cst_95 : f32 to vector<4x32xf32>
    %344 = arith.addf %343, %342 : vector<4x32xf32>
    %345 = arith.divf %343, %344 : vector<4x32xf32>
    %346 = vector.extract_strided_slice %333 {offsets = [0, 64], sizes = [4, 32], strides = [1, 1]} : vector<4x128xf32> to vector<4x32xf32>
    %347 = math.tanh %346 : vector<4x32xf32>
    %348 = vector.extract_strided_slice %333 {offsets = [0, 96], sizes = [4, 32], strides = [1, 1]} : vector<4x128xf32> to vector<4x32xf32>
    %349 = arith.negf %348 : vector<4x32xf32>
    %350 = math.exp %349 : vector<4x32xf32>
    %cst_96 = arith.constant 1.000000e+00 : f32
    %351 = vector.broadcast %cst_96 : f32 to vector<4x32xf32>
    %352 = arith.addf %351, %350 : vector<4x32xf32>
    %353 = arith.divf %351, %352 : vector<4x32xf32>
    %354 = arith.mulf %345, %323 : vector<4x32xf32>
    %355 = arith.mulf %339, %347 : vector<4x32xf32>
    %356 = arith.addf %354, %355 : vector<4x32xf32>
    %357 = math.tanh %356 : vector<4x32xf32>
    %358 = arith.mulf %353, %357 : vector<4x32xf32>
    %359 = vector.broadcast %327 : i32 to vector<4x1xi32>
    %360 = arith.cmpi sgt, %7, %359 : vector<4x1xi32>
    %cst_97 = arith.constant 0.000000e+00 : f32
    %361 = vector.shape_cast %360 : vector<4x1xi1> to vector<4x1xi1>
    %362 = vector.broadcast %361 : vector<4x1xi1> to vector<4x32xi1>
    %363 = vector.broadcast %cst_97 : f32 to vector<4x32xf32>
    %364 = arith.select %362, %358, %363 : vector<4x32xi1>, vector<4x32xf32>
    %365 = vector.shape_cast %364 : vector<4x32xf32> to vector<1x4x32xf32>
    %c0_98 = arith.constant 0 : index
    %366 = arith.index_cast %326 : i32 to index
    %c0_99 = arith.constant 0 : index
    %c0_100 = arith.constant 0 : index
    %367 = vector.load %arg5[%c0_98, %366, %c0_99, %c0_100] : memref<1x8x4x32xf32, #tpu.memory_space<vmem>>, vector<1x1x4x32xf32>
    %368 = vector.shape_cast %367 : vector<1x1x4x32xf32> to vector<1x4x32xf32>
    %369 = vector.shape_cast %365 : vector<1x4x32xf32> to vector<1x1x4x32xf32>
    tpu.vector_store %arg5[%c0_98, %366, %c0_99, %c0_100], %369 {strides = array<i32>} : memref<1x8x4x32xf32, #tpu.memory_space<vmem>>, vector<1x1x4x32xf32>,
    %370 = vector.shape_cast %360 : vector<4x1xi1> to vector<4x1xi1>
    %371 = vector.broadcast %370 : vector<4x1xi1> to vector<4x32xi1>
    %372 = arith.select %371, %358, %320 : vector<4x32xi1>, vector<4x32xf32>
    %373 = vector.shape_cast %360 : vector<4x1xi1> to vector<4x1xi1>
    %374 = vector.broadcast %373 : vector<4x1xi1> to vector<4x32xi1>
    %375 = arith.select %374, %356, %323 : vector<4x32xi1>, vector<4x32xf32>
    %c7_i32_101 = arith.constant 7 : i32
    %c0_i32_102 = arith.constant 0 : i32
    %376 = arith.cmpi eq, %arg0, %c0_i32_102 : i32
    %c7_i32_103 = arith.constant 7 : i32
    %377 = arith.subi %c7_i32_103, %c7_i32_101 : i32
    %378 = arith.select %376, %c7_i32_101, %377 : i32
    %379 = arith.addi %3, %378 : i32
    %c0_104 = arith.constant 0 : index
    %380 = arith.index_cast %378 : i32 to index
    %c0_105 = arith.constant 0 : index
    %c0_106 = arith.constant 0 : index
    %381 = vector.load %arg2[%c0_104, %380, %c0_105, %c0_106] : memref<1x8x4x128xf32, #tpu.memory_space<vmem>>, vector<1x1x4x128xf32>
    %382 = vector.shape_cast %381 : vector<1x1x4x128xf32> to vector<1x4x128xf32>
    %383 = vector.shape_cast %382 : vector<1x4x128xf32> to vector<4x128xf32>
    %cst_107 = arith.constant dense<0.000000e+00> : vector<4x128xf32>
    %384 = tpu.matmul %372, %9, %cst_107 {dimension_numbers = #tpu.dot_dimension_numbers<[1], [0], [0], [1], [0, 0, 1, 1], [], []>} : vector<4x32xf32>, vector<32x128xf32>, vector<4x128xf32> -> vector<4x128xf32>
    %385 = arith.addf %383, %384 : vector<4x128xf32>
    %386 = vector.extract_strided_slice %385 {offsets = [0, 0], sizes = [4, 32], strides = [1, 1]} : vector<4x128xf32> to vector<4x32xf32>
    %387 = arith.negf %386 : vector<4x32xf32>
    %388 = math.exp %387 : vector<4x32xf32>
    %cst_108 = arith.constant 1.000000e+00 : f32
    %389 = vector.broadcast %cst_108 : f32 to vector<4x32xf32>
    %390 = arith.addf %389, %388 : vector<4x32xf32>
    %391 = arith.divf %389, %390 : vector<4x32xf32>
    %392 = vector.extract_strided_slice %385 {offsets = [0, 32], sizes = [4, 32], strides = [1, 1]} : vector<4x128xf32> to vector<4x32xf32>
    %393 = arith.negf %392 : vector<4x32xf32>
    %394 = math.exp %393 : vector<4x32xf32>
    %cst_109 = arith.constant 1.000000e+00 : f32
    %395 = vector.broadcast %cst_109 : f32 to vector<4x32xf32>
    %396 = arith.addf %395, %394 : vector<4x32xf32>
    %397 = arith.divf %395, %396 : vector<4x32xf32>
    %398 = vector.extract_strided_slice %385 {offsets = [0, 64], sizes = [4, 32], strides = [1, 1]} : vector<4x128xf32> to vector<4x32xf32>
    %399 = math.tanh %398 : vector<4x32xf32>
    %400 = vector.extract_strided_slice %385 {offsets = [0, 96], sizes = [4, 32], strides = [1, 1]} : vector<4x128xf32> to vector<4x32xf32>
    %401 = arith.negf %400 : vector<4x32xf32>
    %402 = math.exp %401 : vector<4x32xf32>
    %cst_110 = arith.constant 1.000000e+00 : f32
    %403 = vector.broadcast %cst_110 : f32 to vector<4x32xf32>
    %404 = arith.addf %403, %402 : vector<4x32xf32>
    %405 = arith.divf %403, %404 : vector<4x32xf32>
    %406 = arith.mulf %397, %375 : vector<4x32xf32>
    %407 = arith.mulf %391, %399 : vector<4x32xf32>
    %408 = arith.addf %406, %407 : vector<4x32xf32>
    %409 = math.tanh %408 : vector<4x32xf32>
    %410 = arith.mulf %405, %409 : vector<4x32xf32>
    %411 = vector.broadcast %379 : i32 to vector<4x1xi32>
    %412 = arith.cmpi sgt, %7, %411 : vector<4x1xi32>
    %cst_111 = arith.constant 0.000000e+00 : f32
    %413 = vector.shape_cast %412 : vector<4x1xi1> to vector<4x1xi1>
    %414 = vector.broadcast %413 : vector<4x1xi1> to vector<4x32xi1>
    %415 = vector.broadcast %cst_111 : f32 to vector<4x32xf32>
    %416 = arith.select %414, %410, %415 : vector<4x32xi1>, vector<4x32xf32>
    %417 = vector.shape_cast %416 : vector<4x32xf32> to vector<1x4x32xf32>
    %c0_112 = arith.constant 0 : index
    %418 = arith.index_cast %378 : i32 to index
    %c0_113 = arith.constant 0 : index
    %c0_114 = arith.constant 0 : index
    %419 = vector.load %arg5[%c0_112, %418, %c0_113, %c0_114] : memref<1x8x4x32xf32, #tpu.memory_space<vmem>>, vector<1x1x4x32xf32>
    %420 = vector.shape_cast %419 : vector<1x1x4x32xf32> to vector<1x4x32xf32>
    %421 = vector.shape_cast %417 : vector<1x4x32xf32> to vector<1x1x4x32xf32>
    tpu.vector_store %arg5[%c0_112, %418, %c0_113, %c0_114], %421 {strides = array<i32>} : memref<1x8x4x32xf32, #tpu.memory_space<vmem>>, vector<1x1x4x32xf32>,
    %422 = vector.shape_cast %412 : vector<4x1xi1> to vector<4x1xi1>
    %423 = vector.broadcast %422 : vector<4x1xi1> to vector<4x32xi1>
    %424 = arith.select %423, %410, %372 : vector<4x32xi1>, vector<4x32xf32>
    %425 = vector.shape_cast %412 : vector<4x1xi1> to vector<4x1xi1>
    %426 = vector.broadcast %425 : vector<4x1xi1> to vector<4x32xi1>
    %427 = arith.select %426, %408, %375 : vector<4x32xi1>, vector<4x32xf32>
    %c8_i32_115 = arith.constant 8 : i32
    %c0_116 = arith.constant 0 : index
    %c0_117 = arith.constant 0 : index
    %428 = vector.load %arg8[%c0_116, %c0_117] : memref<4x32xf32, #tpu.memory_space<vmem>>, vector<4x32xf32>
    tpu.vector_store %arg8[%c0_116, %c0_117], %424 {strides = array<i32>} : memref<4x32xf32, #tpu.memory_space<vmem>>, vector<4x32xf32>,
    %c0_118 = arith.constant 0 : index
    %c0_119 = arith.constant 0 : index
    %429 = vector.load %arg9[%c0_118, %c0_119] : memref<4x32xf32, #tpu.memory_space<vmem>>, vector<4x32xf32>
    tpu.vector_store %arg9[%c0_118, %c0_119], %427 {strides = array<i32>} : memref<4x32xf32, #tpu.memory_space<vmem>>, vector<4x32xf32>,
    %c1_i32_120 = arith.constant 1 : i32
    %430 = arith.cmpi eq, %arg1, %c1_i32_120 : i32
    %431 = arith.extui %430 : i1 to i32
    %c0_i32_121 = arith.constant 0 : i32
    %432 = arith.cmpi ne, %431, %c0_i32_121 : i32
    scf.if %432 {
      %c0_122 = arith.constant 0 : index
      %c0_123 = arith.constant 0 : index
      %c0_124 = arith.constant 0 : index
      %433 = vector.load %arg6[%c0_122, %c0_123, %c0_124] : memref<1x4x32xf32, #tpu.memory_space<vmem>>, vector<1x4x32xf32>
      %434 = vector.shape_cast %433 : vector<1x4x32xf32> to vector<4x32xf32>
      %435 = vector.shape_cast %424 : vector<4x32xf32> to vector<1x4x32xf32>
      tpu.vector_store %arg6[%c0_122, %c0_123, %c0_124], %435 {strides = array<i32>} : memref<1x4x32xf32, #tpu.memory_space<vmem>>, vector<1x4x32xf32>,
      %c0_125 = arith.constant 0 : index
      %c0_126 = arith.constant 0 : index
      %c0_127 = arith.constant 0 : index
      %436 = vector.load %arg7[%c0_125, %c0_126, %c0_127] : memref<1x4x32xf32, #tpu.memory_space<vmem>>, vector<1x4x32xf32>
      %437 = vector.shape_cast %436 : vector<1x4x32xf32> to vector<4x32xf32>
      %438 = vector.shape_cast %427 : vector<4x32xf32> to vector<1x4x32xf32>
      tpu.vector_store %arg7[%c0_125, %c0_126, %c0_127], %438 {strides = array<i32>} : memref<1x4x32xf32, #tpu.memory_space<vmem>>, vector<1x4x32xf32>,
    } else {
    }
    return
  }
  func.func @transform_0(%arg0: i32, %arg1: i32) -> (i32, i32, i32, i32) {
    %c0_i32 = arith.constant 0 : i32
    %0 = arith.cmpi eq, %arg0, %c0_i32 : i32
    %c1_i32 = arith.constant 1 : i32
    %1 = arith.subi %c1_i32, %arg1 : i32
    %2 = arith.select %0, %arg1, %1 : i32
    %c0_i32_0 = arith.constant 0 : i32
    %c0_i32_1 = arith.constant 0 : i32
    %c0_i32_2 = arith.constant 0 : i32
    return %arg0, %2, %c0_i32_0, %c0_i32_1 : i32, i32, i32, i32
  }
  func.func @transform_1(%arg0: i32, %arg1: i32) -> (i32, i32) {
    %c0_i32 = arith.constant 0 : i32
    %c0_i32_0 = arith.constant 0 : i32
    %c0_i32_1 = arith.constant 0 : i32
    return %c0_i32, %c0_i32_0 : i32, i32
  }
  func.func @transform_2(%arg0: i32, %arg1: i32) -> (i32, i32, i32) {
    %c0_i32 = arith.constant 0 : i32
    %c0_i32_0 = arith.constant 0 : i32
    %c0_i32_1 = arith.constant 0 : i32
    return %arg0, %c0_i32, %c0_i32_0 : i32, i32, i32
  }
  func.func @transform_3(%arg0: i32, %arg1: i32) -> (i32, i32, i32, i32) {
    %c0_i32 = arith.constant 0 : i32
    %0 = arith.cmpi eq, %arg0, %c0_i32 : i32
    %c1_i32 = arith.constant 1 : i32
    %1 = arith.subi %c1_i32, %arg1 : i32
    %2 = arith.select %0, %arg1, %1 : i32
    %c0_i32_0 = arith.constant 0 : i32
    %c0_i32_1 = arith.constant 0 : i32
    %c0_i32_2 = arith.constant 0 : i32
    return %arg0, %2, %c0_i32_0, %c0_i32_1 : i32, i32, i32, i32
  }
  func.func @transform_4(%arg0: i32, %arg1: i32) -> (i32, i32, i32) {
    %c0_i32 = arith.constant 0 : i32
    %c0_i32_0 = arith.constant 0 : i32
    %c0_i32_1 = arith.constant 0 : i32
    return %arg0, %c0_i32, %c0_i32_0 : i32, i32, i32
  }
  func.func @transform_5(%arg0: i32, %arg1: i32) -> (i32, i32, i32) {
    %c0_i32 = arith.constant 0 : i32
    %c0_i32_0 = arith.constant 0 : i32
    %c0_i32_1 = arith.constant 0 : i32
    return %arg0, %c0_i32, %c0_i32_0 : i32, i32, i32
  }
}

</mosaic_0001>

<llo_original>
// kernel: tpu_custom_call.1
$region0: #{tpu_custom_call.1}
  #allocation0 [shape = 'u32[]', space=smem, size = 0x4, offset = 0x4, fixed_abs, tag = 'smem constant byte address 0x4 - core index']
  #allocation1 [shape = 'u32[144,128]{1,0:T(1,128)}', space=vmem, size = 0x12000, scoped, tag = 'internal scratch']
  #allocation2 [shape = 'f32[4,32]{1,0:T(4,128)}', space=vmem, size = 0x800, scoped, tag = 'scratch operand']
  #allocation3 [shape = 'f32[4,32]{1,0:T(4,128)}', space=vmem, size = 0x800, scoped, tag = 'scratch operand']
  %s0 = inlined_call_operand.hbm [shape: f32[2,16,4,128], index: 0, kind: input, shape index: {}]
  %s1 = inlined_call_operand.vmem [shape: s32[4,1], index: 1, kind: input, shape index: {}]
  %s2 = inlined_call_operand.hbm [shape: f32[2,32,128], index: 2, kind: input, shape index: {}]
  %s3 = inlined_call_operand.hbm [shape: f32[2,16,4,32], index: 3, kind: output, shape index: {0}]
  %s4 = inlined_call_operand.hbm [shape: f32[2,4,32], index: 4, kind: output, shape index: {1}]
  %s5 = inlined_call_operand.hbm [shape: f32[2,4,32], index: 5, kind: output, shape index: {2}]
  %6 = xla_tuple %s3, %s4, %s5
  %s7 = sld [smem:[#allocation0]]
  $region77: #{tpu_custom_call.1} parent=0
    _
  %s9 = ssub.s32 1, %s7
  %s10 = scalar_select 0, %s9, %s7
  $region1: #{tpu_custom_call.1} parent=0
    #allocation4 [shape = 'u8[32768]{0}', space=vmem, size = 0x8000, scoped, tag = 'input window, operand 0']
    #allocation5 [shape = 's32[2]{0}', space=sflag, size = 0x8, scoped, tag = 'scoped memory for tpu_custom_call.1']
    #allocation6 [shape = 's32[2]{0}', space=sflag, size = 0x8, scoped, tag = 'scoped memory for tpu_custom_call.1']
    #allocation7 [shape = 'u8[32768]{0}', space=vmem, size = 0x8000, scoped, tag = 'input window, operand 2']
    #allocation8 [shape = 's32[2]{0}', space=sflag, size = 0x8, scoped, tag = 'scoped memory for tpu_custom_call.1']
    #allocation9 [shape = 'u8[32768]{0}', space=vmem, size = 0x8000, scoped, tag = 'output window, operand 0']
    #allocation10 [shape = 'u8[4096]{0}', space=vmem, size = 0x1000, scoped, tag = 'output window, operand 1']
    #allocation11 [shape = 's32[2]{0}', space=sflag, size = 0x8, scoped, tag = 'scoped memory for tpu_custom_call.1']
    #allocation12 [shape = 'u8[4096]{0}', space=vmem, size = 0x1000, scoped, tag = 'output window, operand 2']
    %11 = vsyncpa [#allocation5], 0
    %s12 = scalar_lea.sflag [#allocation5], 1
    %13 = vsyncpa %s12, 0
    %14 = vsyncpa [#allocation8], 0
    %s15 = scalar_lea.sflag [#allocation8], 1
    %16 = vsyncpa %s15, 0
    %17 = vsyncpa [#allocation6], 0
    %s18 = scalar_lea.sflag [#allocation6], 1
    %19 = vsyncpa %s18, 0
    %20 = vsyncpa [#allocation11], 0
    %s21 = scalar_lea.sflag [#allocation11], 1
    %22 = vsyncpa %s21, 0
    loop: start=0, step=1, limit=6
    $region2: #{tpu_custom_call.1} parent=1 // loop_pre_header
      _
    $region3: #{tpu_custom_call.1} parent=1 // loop_header
      %s24 = sphi 0, %s28
      %p25 = scmp.ge.s32.totalorder %s24, 6
      %s31 = sphi 0, %s43
      %s32 = sphi 0, %s39
      %s33 = sphi 0, %s31
      %s34 = sphi 0, %s32
      %s35 = sphi 0, %s33
      %s36 = sphi 0, %s34
      %s54 = sphi 0, %s56
      %s57 = sphi 0, %s54
      %s58 = sphi 0, %s57
      %s74 = sphi 0, %s58
      %s78 = sphi 0, %s78
      %s80 = sphi 0, %s78
      %s81 = sphi 0, %s80
      %s95 = sphi 0, %s81
      %s101 = sphi 0, %s103
      %s104 = sphi 0, %s101
      %s105 = sphi 0, %s104
      %s121 = sphi 0, %s105
      %s135 = sphi 0, %s137
      %s138 = sphi 0, %s135
      %s139 = sphi 0, %s138
      %s155 = sphi 0, %s139
      %s161 = sphi 0, %s163
      %s164 = sphi 0, %s161
      %s165 = sphi 0, %s164
      %s181 = sphi 0, %s165
      %s187 = sphi 0, %s189
      %s190 = sphi 0, %s187
      %s191 = sphi 0, %s190
      %s207 = sphi 0, %s191
    $region4: #{tpu_custom_call.1} parent=1 // loop_header_branch
      %27 = sbr.rel (%p25) target = $region8
    $region5: #{tpu_custom_call.1} parent=1 // loop_body
      %s29 = ssub.s32 %s24, 1
      %s30 = ssub.s32 %s24, 2
      %s37 = sadd.s32 1, %s32
      %p38 = scmp.ge.s32.totalorder %s37, 2
      %s39 = scalar_select %p38, 0, %s37
      %s40 = sadd.s32 1, %s31
      %s41 = scalar_select %p38, %s40, %s31
      %p42 = scmp.ge.s32.totalorder %s41, 2
      %s43 = scalar_select %p42, 0, %s41
      %p44 = scmp.eq.s32.totalorder %s31, 0
      %s45 = ssub.s32 1, %s32
      %s46 = scalar_select %p44, %s32, %s45
      %p47 = scmp.eq.s32.totalorder %s43, 0
      %s48 = ssub.s32 1, %s39
      %s49 = scalar_select %p47, %s39, %s48
      %s50 = ssub.s32 %s31, %s43
      %s51 = ssub.s32 %s46, %s49
      %s52 = sor.u32 %s50, %s51
      %p53 = scmp.eq.s32.totalorder %s52, 0
      %s55 = sadd.s32 %s54, 1
      %s56 = scalar_select %p53, %s54, %s55
      %p59 = pneg %p53
      %p60 = scmp.eq.s32.totalorder %s24, 3
      %p61 = por %p59, %p60
      %p62 = scmp.ne.s32.totalorder %s54, %s57
      %p63 = scmp.eq.s32.totalorder %s24, 0
      %p64 = por %p62, %p63
      %p65 = scmp.ne.s32.totalorder %s54, %s57
      %p66 = scmp.eq.s32.totalorder %s29, 3
      %p67 = por %p65, %p66
      %p68 = scmp.ne.s32.totalorder %s57, %s58
      %p69 = scmp.eq.s32.totalorder %s29, 0
      %p70 = por %p68, %p69
      %p71 = scmp.ne.s32.totalorder %s57, %s58
      %p72 = scmp.eq.s32.totalorder %s30, 3
      %p73 = por %p71, %p72
      %p75 = scmp.ne.s32.totalorder %s58, %s74
      %p76 = scmp.eq.s32.totalorder %s30, 0
      %p77 = por %p75, %p76
      %s79 = sadd.s32 %s78, 1
      %p82 = scmp.eq.s32.totalorder %s24, 3
      %p83 = scmp.ne.s32.totalorder %s78, %s80
      %p84 = scmp.eq.s32.totalorder %s24, 0
      %p85 = por %p83, %p84
      %p86 = scmp.ne.s32.totalorder %s78, %s80
      %p87 = scmp.eq.s32.totalorder %s29, 3
      %p88 = por %p86, %p87
      %p89 = scmp.ne.s32.totalorder %s80, %s81
      %p90 = scmp.eq.s32.totalorder %s29, 0
      %p91 = por %p89, %p90
      %p92 = scmp.ne.s32.totalorder %s80, %s81
      %p93 = scmp.eq.s32.totalorder %s30, 3
      %p94 = por %p92, %p93
      %p96 = scmp.ne.s32.totalorder %s81, %s95
      %p97 = scmp.eq.s32.totalorder %s30, 0
      %p98 = por %p96, %p97
      %s99 = ssub.s32 %s31, %s43
      %p100 = scmp.eq.s32.totalorder %s99, 0
      %s102 = sadd.s32 %s101, 1
      %s103 = scalar_select %p100, %s101, %s102
      %p106 = pneg %p100
      %p107 = scmp.eq.s32.totalorder %s24, 3
      %p108 = por %p106, %p107
      %p109 = scmp.ne.s32.totalorder %s101, %s104
      %p110 = scmp.eq.s32.totalorder %s24, 0
      %p111 = por %p109, %p110
      %p112 = scmp.ne.s32.totalorder %s101, %s104
      %p113 = scmp.eq.s32.totalorder %s29, 3
      %p114 = por %p112, %p113
      %p115 = scmp.ne.s32.totalorder %s104, %s105
      %p116 = scmp.eq.s32.totalorder %s29, 0
      %p117 = por %p115, %p116
      %p118 = scmp.ne.s32.totalorder %s104, %s105
      %p119 = scmp.eq.s32.totalorder %s30, 3
      %p120 = por %p118, %p119
      %p122 = scmp.ne.s32.totalorder %s105, %s121
      %p123 = scmp.eq.s32.totalorder %s30, 0
      %p124 = por %p122, %p123
      %p125 = scmp.eq.s32.totalorder %s31, 0
      %s126 = ssub.s32 1, %s32
      %s127 = scalar_select %p125, %s32, %s126
      %p128 = scmp.eq.s32.totalorder %s43, 0
      %s129 = ssub.s32 1, %s39
      %s130 = scalar_select %p128, %s39, %s129
      %s131 = ssub.s32 %s31, %s43
      %s132 = ssub.s32 %s127, %s130
      %s133 = sor.u32 %s131, %s132
      %p134 = scmp.eq.s32.totalorder %s133, 0
      %s136 = sadd.s32 %s135, 1
      %s137 = scalar_select %p134, %s135, %s136
      %p140 = pneg %p134
      %p141 = scmp.eq.s32.totalorder %s24, 3
      %p142 = por %p140, %p141
      %p143 = scmp.ne.s32.totalorder %s135, %s138
      %p144 = scmp.eq.s32.totalorder %s24, 0
      %p145 = por %p143, %p144
      %p146 = scmp.ne.s32.totalorder %s135, %s138
      %p147 = scmp.eq.s32.totalorder %s29, 3
      %p148 = por %p146, %p147
      %p149 = scmp.ne.s32.totalorder %s138, %s139
      %p150 = scmp.eq.s32.totalorder %s29, 0
      %p151 = por %p149, %p150
      %p152 = scmp.ne.s32.totalorder %s138, %s139
      %p153 = scmp.eq.s32.totalorder %s30, 3
      %p154 = por %p152, %p153
      %p156 = scmp.ne.s32.totalorder %s139, %s155
      %p157 = scmp.eq.s32.totalorder %s30, 0
      %p158 = por %p156, %p157
      %s159 = ssub.s32 %s31, %s43
      %p160 = scmp.eq.s32.totalorder %s159, 0
      %s162 = sadd.s32 %s161, 1
      %s163 = scalar_select %p160, %s161, %s162
      %p166 = pneg %p160
      %p167 = scmp.eq.s32.totalorder %s24, 3
      %p168 = por %p166, %p167
      %p169 = scmp.ne.s32.totalorder %s161, %s164
      %p170 = scmp.eq.s32.totalorder %s24, 0
      %p171 = por %p169, %p170
      %p172 = scmp.ne.s32.totalorder %s161, %s164
      %p173 = scmp.eq.s32.totalorder %s29, 3
      %p174 = por %p172, %p173
      %p175 = scmp.ne.s32.totalorder %s164, %s165
      %p176 = scmp.eq.s32.totalorder %s29, 0
      %p177 = por %p175, %p176
      %p178 = scmp.ne.s32.totalorder %s164, %s165
      %p179 = scmp.eq.s32.totalorder %s30, 3
      %p180 = por %p178, %p179
      %p182 = scmp.ne.s32.totalorder %s165, %s181
      %p183 = scmp.eq.s32.totalorder %s30, 0
      %p184 = por %p182, %p183
      %s185 = ssub.s32 %s31, %s43
      %p186 = scmp.eq.s32.totalorder %s185, 0
      %s188 = sadd.s32 %s187, 1
      %s189 = scalar_select %p186, %s187, %s188
      %p192 = pneg %p186
      %p193 = scmp.eq.s32.totalorder %s24, 3
      %p194 = por %p192, %p193
      %p195 = scmp.ne.s32.totalorder %s187, %s190
      %p196 = scmp.eq.s32.totalorder %s24, 0
      %p197 = por %p195, %p196
      %p198 = scmp.ne.s32.totalorder %s187, %s190
      %p199 = scmp.eq.s32.totalorder %s29, 3
      %p200 = por %p198, %p199
      %p201 = scmp.ne.s32.totalorder %s190, %s191
      %p202 = scmp.eq.s32.totalorder %s29, 0
      %p203 = por %p201, %p202
      %p204 = scmp.ne.s32.totalorder %s190, %s191
      %p205 = scmp.eq.s32.totalorder %s30, 3
      %p206 = por %p204, %p205
      %p208 = scmp.ne.s32.totalorder %s191, %s207
      %p209 = scmp.eq.s32.totalorder %s30, 0
      %p210 = por %p208, %p209
      %p211 = scmp.le.s32.totalorder 1, %s24
      %p212 = scmp.lt.s32.totalorder %s24, 5
      %p213 = pnand %p211, %p212
      %p214 = pneg %p213
      // Predicated region
      $region9: #{tpu_custom_call.1} parent=5 // pred_check
        _
      $region10: #{tpu_custom_call.1} parent=5 // pred_check_branch
        %216 = sbr.rel (%p213) target = $region12
      $region11: #{tpu_custom_call.1} parent=5 // pred_region
        %s217 = ssub.s32 %s24, 1
        // Predicated region
        $region13: #{tpu_custom_call.1} parent=11 // pred_check
          %p218 = pneg %p91
        $region14: #{tpu_custom_call.1} parent=11 // pred_check_branch
          %220 = sbr.rel (%p218) target = $region16
        $region15: #{tpu_custom_call.1} parent=11 // pred_region
          _
        $region16: #{tpu_custom_call.1} parent=11 // pred_fallthru
          _
      $region12: #{tpu_custom_call.1} parent=5 // pred_fallthru
        _
      %p221 = scmp.lt.s32.totalorder %s24, 4
      // Predicated region
      $region17: #{tpu_custom_call.1} parent=5 // pred_check
        %p222 = pneg %p221
      $region18: #{tpu_custom_call.1} parent=5 // pred_check_branch
        %224 = sbr.rel (%p222) target = $region20
      $region19: #{tpu_custom_call.1} parent=5 // pred_region
        // Predicated region
        $region21: #{tpu_custom_call.1} parent=19 // pred_check
          %p225 = pneg %p64
        $region22: #{tpu_custom_call.1} parent=19 // pred_check_branch
          %227 = sbr.rel (%p225) target = $region24
        $region23: #{tpu_custom_call.1} parent=19 // pred_region
          %s228 = sand.u32 %s54, 1
          %s229 = scalar_lea.sflag [#allocation5], %s228
          %s230 = sand.u32 %s54, 1
          %s231 = smul.addr %s230, 32
          %s232 = scalar_lea.vmem [#allocation4], %s231
          %p233 = scmp.eq.s32.totalorder %s31, 0
          %s234 = ssub.s32 1, %s32
          %s235 = scalar_select %p233, %s32, %s234
          %s236 = smul.u32 8, %s235
          %s238 = ssub.s32 512, 512
          %239 = vsyncadd %s229, %s238
          %s240 = smul.addr %s31, 16
          %s241 = sadd.s32 %s236, %s240
          %s242 = smul.addr %s241, 64
          %s243 = scalar_lea.hbm %s0, %s242
          %s244 = sshll.u32 %s232, 4
          %s245 = int_to_ptr.vmem [resolvable:$true] %s244
          %250 = dma.hbm_to_vmem [thread:$0]  %s243, 512, %s245, %s229, 64, 64, 4
        $region24: #{tpu_custom_call.1} parent=19 // pred_fallthru
          _
        // Predicated region
        $region25: #{tpu_custom_call.1} parent=19 // pred_check
          %p251 = pneg %p111
        $region26: #{tpu_custom_call.1} parent=19 // pred_check_branch
          %253 = sbr.rel (%p251) target = $region28
        $region27: #{tpu_custom_call.1} parent=19 // pred_region
          %s254 = sand.u32 %s101, 1
          %s255 = scalar_lea.sflag [#allocation8], %s254
          %s256 = sand.u32 %s101, 1
          %s257 = smul.addr %s256, 32
          %s258 = scalar_lea.vmem [#allocation7], %s257
          %s260 = ssub.s32 512, 512
          %261 = vsyncadd %s255, %s260
          %s262 = smul.addr %s31, 4
          %s263 = smul.addr %s262, 128
          %s264 = scalar_lea.hbm %s2, %s263
          %s265 = sshll.u32 %s258, 4
          %s266 = int_to_ptr.vmem [resolvable:$true] %s265
          %271 = dma.hbm_to_vmem [thread:$0]  %s264, 512, %s266, %s255, 128, 128, 8
        $region28: #{tpu_custom_call.1} parent=19 // pred_fallthru
          _
      $region20: #{tpu_custom_call.1} parent=5 // pred_fallthru
        _
      %p272 = scmp.le.s32.totalorder 1, %s24
      %p273 = scmp.lt.s32.totalorder %s24, 5
      %p274 = pnand %p272, %p273
      %p275 = pneg %p274
      // Predicated region
      $region29: #{tpu_custom_call.1} parent=5 // pred_check
        _
      $region30: #{tpu_custom_call.1} parent=5 // pred_check_branch
        %277 = sbr.rel (%p274) target = $region32
      $region31: #{tpu_custom_call.1} parent=5 // pred_region
        %s278 = ssub.s32 %s24, 1
        %s279 = sand.u32 %s57, 1
        %s280 = scalar_lea.sflag [#allocation5], %s279
        %s281 = sand.u32 %s57, 1
        %s282 = smul.addr %s281, 32
        %s283 = scalar_lea.vmem [#allocation4], %s282
        // Predicated region
        $region33: #{tpu_custom_call.1} parent=31 // pred_check
          %p284 = pneg %p70
        $region34: #{tpu_custom_call.1} parent=31 // pred_check_branch
          %286 = sbr.rel (%p284) target = $region36
        $region35: #{tpu_custom_call.1} parent=31 // pred_region
          %287 = dma.done %s280, 512
        $region36: #{tpu_custom_call.1} parent=31 // pred_fallthru
          _
        %s288 = sand.u32 %s104, 1
        %s289 = scalar_lea.sflag [#allocation8], %s288
        %s290 = sand.u32 %s104, 1
        %s291 = smul.addr %s290, 32
        %s292 = scalar_lea.vmem [#allocation7], %s291
        // Predicated region
        $region37: #{tpu_custom_call.1} parent=31 // pred_check
          %p293 = pneg %p117
        $region38: #{tpu_custom_call.1} parent=31 // pred_check_branch
          %295 = sbr.rel (%p293) target = $region40
        $region39: #{tpu_custom_call.1} parent=31 // pred_region
          %296 = dma.done %s289, 512
        $region40: #{tpu_custom_call.1} parent=31 // pred_fallthru
          _
        %s297 = sand.u32 %s57, 1
        %s298 = scalar_lea.sflag [#allocation5], %s297
        %s299 = sand.u32 %s57, 1
        %s300 = smul.addr %s299, 32
        %s301 = scalar_lea.vmem [#allocation4], %s300
        %p302 = pneg %p70
        %p303 = pneg %p67
        %p304 = pneg %p91
        %p305 = pneg %p88
        %s306 = sand.u32 %s104, 1
        %s307 = scalar_lea.sflag [#allocation8], %s306
        %s308 = sand.u32 %s104, 1
        %s309 = smul.addr %s308, 32
        %s310 = scalar_lea.vmem [#allocation7], %s309
        %p311 = pneg %p117
        %p312 = pneg %p114
        %p313 = pneg %p151
        %p314 = pneg %p148
        %s315 = sand.u32 %s138, 1
        %s316 = scalar_lea.sflag [#allocation6], %s315
        %s317 = sand.u32 %s138, 1
        %s318 = smul.addr %s317, 32
        %s319 = scalar_lea.vmem [#allocation9], %s318
        %p320 = pneg %p177
        %p321 = pneg %p174
        %s322 = sand.u32 %s29, 1
        %s323 = scalar_lea.sflag [#allocation11], %s322
        %s324 = sand.u32 %s164, 1
        %s325 = smul.addr %s324, 4
        %s326 = scalar_lea.vmem [#allocation10], %s325
        %p327 = pneg %p203
        %p328 = pneg %p200
        %s329 = sand.u32 %s29, 1
        %s330 = scalar_lea.sflag [#allocation11], %s329
        %s331 = sand.u32 %s190, 1
        %s332 = smul.addr %s331, 4
        %s333 = scalar_lea.vmem [#allocation12], %s332
        %p334 = scmp.eq.s32.totalorder %s33, 0
        %s335 = ssub.s32 1, %s34
        %s336 = scalar_select %p334, %s34, %s335
        %s337 = smul.u32 8, %s336
        %p338 = scmp.eq.s32.totalorder %s33, 0
        %s339 = ssub.s32 1, %s34
        %s340 = scalar_select %p338, %s34, %s339
        %s341 = smul.u32 8, %s340
        %p342 = scmp.eq.s32.totalorder %s33, 0
        %s343 = ssub.s32 1, %s34
        %s344 = scalar_select %p342, %s34, %s343
        %s345 = smul.u32 %s344, 8
        %p346 = scmp.eq.s32.totalorder %s34, 0
        // Predicated region
        $region41: #{tpu_custom_call.1} parent=31 // pred_check
          %p347 = pneg %p346
        $region42: #{tpu_custom_call.1} parent=31 // pred_check_branch
          %349 = sbr.rel (%p347) target = $region44
        $region43: #{tpu_custom_call.1} parent=31 // pred_region
          %vm350 = vcmask 257024
          %351 = vst.msk [vmem:[#allocation2] sm:$0xf] %vm350, 0.0
          %352 = vst.msk [vmem:[#allocation3] sm:$0xf] %vm350, 0.0
        $region44: #{tpu_custom_call.1} parent=31 // pred_fallthru
          _
        %v353 = vld [vmem:[%s1] sm:$0xf]
        %v354 = vld [vmem:[%s292] sm:$0xff]
        %v355 = vld [vmem:[%s292 + $0x8] sm:$0xff]
        %v356 = vld [vmem:[%s292 + $0x10] sm:$0xff]
        %v357 = vld [vmem:[%s292 + $0x18] sm:$0xff]
        %v358 = vld [vmem:[#allocation2] sm:$0xf]
        %v359 = vld [vmem:[#allocation3] sm:$0xf]
        %s360 = scalar_select %p342, 0, 7
        %s361 = sadd.s32 %s345, %s360
        %s362 = smul.u32 %s360, 4
        %s363 = scalar_lea.vmem %s283, %s362 [#allocation4]
        %v364 = vld [vmem:[%s363] sm:$0xf]
        %vm365 = vcmask 261120
        %v367 = vsel %vm365, %v358, 0
        %369 = vmatprep.subr.mxu0 0.0
        %370 = vmatpush1.msra.mxu0 0.0
        %371 = vmatprep.subr.mxu0 0.0
        %372 = vmatpush1.msra.mxu0 0.0
        %373 = vmatprep.subr.mxu0 0.0
        %374 = vmatpush1.msra.mxu0 0.0
        %375 = vmatprep.subr.mxu0 0.0
        %376 = vmatpush1.msra.mxu0 0.0
        %377 = vmatprep.subr.mxu0 0.0
        %378 = vmatpush1.msra.mxu0 0.0
        %379 = vmatprep.subr.mxu0 0.0
        %380 = vmatpush1.msra.mxu0 0.0
        %381 = vmatprep.subr.mxu0 0.0
        %382 = vmatpush1.msra.mxu0 0.0
        %383 = vmatprep.subr.mxu0 0.0
        %384 = vmatpush1.msra.mxu0 0.0
        %385 = vmatprep.subr.mxu0 0.0
        %386 = vmatpush1.msra.mxu0 0.0
        %387 = vmatprep.subr.mxu0 0.0
        %388 = vmatpush1.msra.mxu0 0.0
        %389 = vmatprep.subr.mxu0 0.0
        %390 = vmatpush1.msra.mxu0 0.0
        %391 = vmatprep.subr.mxu0 0.0
        %392 = vmatpush1.msra.mxu0 0.0
        %393 = vmatprep.subr.mxu0 0.0
        %394 = vmatpush1.msra.mxu0 %v357
        %395 = vmatprep.subr.mxu0 0.0
        %396 = vmatpush1.msra.mxu0 %v356
        %397 = vmatprep.subr.mxu0 0.0
        %398 = vmatpush1.msra.mxu0 %v355
        %399 = vmatprep.subr.mxu0 0.0
        %400 = vmatpush1.msra.mxu0 %v354
        %401 = vmatprep.subr.mxu0 0.0
        %402 = vmatpush2.msra.mxu0 0.0
        %403 = vmatprep.subr.mxu0 0.0
        %404 = vmatpush2.msra.mxu0 0.0
        %405 = vmatprep.subr.mxu0 0.0
        %406 = vmatpush2.msra.mxu0 0.0
        %407 = vmatprep.subr.mxu0 0.0
        %408 = vmatpush2.msra.mxu0 0.0
        %409 = vmatprep.subr.mxu0 0.0
        %410 = vmatpush2.msra.mxu0 0.0
        %411 = vmatprep.subr.mxu0 0.0
        %412 = vmatpush2.msra.mxu0 0.0
        %413 = vmatprep.subr.mxu0 0.0
        %414 = vmatpush2.msra.mxu0 0.0
        %415 = vmatprep.subr.mxu0 0.0
        %416 = vmatpush2.msra.mxu0 0.0
        %417 = vmatprep.subr.mxu0 0.0
        %418 = vmatpush2.msra.mxu0 0.0
        %419 = vmatprep.subr.mxu0 0.0
        %420 = vmatpush2.msra.mxu0 0.0
        %421 = vmatprep.subr.mxu0 0.0
        %422 = vmatpush2.msra.mxu0 0.0
        %423 = vmatprep.subr.mxu0 0.0
        %424 = vmatpush2.msra.mxu0 0.0
        %425 = vmatprep.subr.mxu0 0.0
        %426 = vmatpush2.msra.mxu0 0.0
        %427 = vmatprep.subr.mxu0 0.0
        %428 = vmatpush2.msra.mxu0 0.0
        %429 = vmatprep.subr.mxu0 0.0
        %430 = vmatpush2.msra.mxu0 0.0
        %431 = vmatprep.subr.mxu0 0.0
        %432 = vmatpush2.msra.mxu0 0.0
        %433 = vmatprep.mubr.f32.mxu0 0.0
        %434 = vmatmul.mubr.f32.gmra.mxu0 %v367
        %v435 = vpop.f32.mrf.mxu0
        %v436 = vadd.f32 0.0, %v435
        %v437 = vpop.f32.mrf.mxu0
        %438 = vdwg.mxu0
        %v439 = vadd.f32 %v364, %v436
        %v440 = vxor.u32 %v439, 2147483648
        %v441 = vmul.f32 %v440, 1.442695
        %v442 = vpow.pop %v441
        %v443 = vadd.f32 %v442, 1.0
        %v444 = vrcp.pop %v443
        %v445 = vmul.f32 1.0, %v444
        %v446 = vtanh.pop %v439
        %448 = vrot.lane.b32.xlu0 %v359, 32
        %v449 = vpop.permute.xlu0 %448
        %v451 = vmul.f32 %v445, %v449
        %453 = vrot.lane.b32.xlu0 %v446, 64
        %v454 = vpop.permute.xlu0 %453
        %v456 = vmul.f32 %v445, %v454
        %458 = vrot.lane.b32.xlu0 %v456, 32
        %v459 = vpop.permute.xlu0 %458
        %v461 = vadd.f32 %v451, %v459
        %v462 = vtanh.pop %v461
        %464 = vrot.lane.b32.xlu0 %v462, 64
        %v465 = vpop.permute.xlu0 %464
        %v467 = vmul.f32 %v445, %v465
        %v468 = vstv %s361
        %vm469 = vcmp.gt.s32.totalorder %v353, %v468
        %v470 = vsel %vm469, 1, 0
        %471 = vset.pattern.permute.xlu0 0
        %472 = vperm.xlu0 %471, %v470
        %v473 = vpop.permute.xlu0 %472
        %vm474 = vcmp.eq.s32.totalorder %v473, 1
        %v475 = vsel %vm474, %v467, 0.0
        %477 = vrot.lane.b32.xlu0 %v475, 32
        %v478 = vpop.permute.xlu0 %477
        %s480 = scalar_lea.vmem %s319, %s362 [#allocation9]
        %vm481 = vcmask 257024
        %482 = vst.msk [vmem:[%s480] sm:$0xf] %vm481, %v478
        %483 = vrot.lane.b32.xlu0 %v358, 96
        %v484 = vpop.permute.xlu0 %483
        %v486 = vsel %vm474, %v467, %v484
        %v487 = vsel %vm474, %v461, %v449
        %s488 = scalar_select %p342, 1, 6
        %s489 = sadd.s32 %s345, %s488
        %s490 = smul.u32 %s488, 4
        %s491 = scalar_lea.vmem %s283, %s490 [#allocation4]
        %v492 = vld [vmem:[%s491] sm:$0xf]
        %494 = vrot.lane.b32.xlu0 %v486, 32
        %v495 = vpop.permute.xlu0 %494
        %v496 = vsel %vm365, %v495, 0
        %498 = vmatprep.subr.mxu0 0.0
        %499 = vmatpush1.msra.mxu0 0.0
        %500 = vmatprep.subr.mxu0 0.0
        %501 = vmatpush1.msra.mxu0 0.0
        %502 = vmatprep.subr.mxu0 0.0
        %503 = vmatpush1.msra.mxu0 0.0
        %504 = vmatprep.subr.mxu0 0.0
        %505 = vmatpush1.msra.mxu0 0.0
        %506 = vmatprep.subr.mxu0 0.0
        %507 = vmatpush1.msra.mxu0 0.0
        %508 = vmatprep.subr.mxu0 0.0
        %509 = vmatpush1.msra.mxu0 0.0
        %510 = vmatprep.subr.mxu0 0.0
        %511 = vmatpush1.msra.mxu0 0.0
        %512 = vmatprep.subr.mxu0 0.0
        %513 = vmatpush1.msra.mxu0 0.0
        %514 = vmatprep.subr.mxu0 0.0
        %515 = vmatpush1.msra.mxu0 0.0
        %516 = vmatprep.subr.mxu0 0.0
        %517 = vmatpush1.msra.mxu0 0.0
        %518 = vmatprep.subr.mxu0 0.0
        %519 = vmatpush1.msra.mxu0 0.0
        %520 = vmatprep.subr.mxu0 0.0
        %521 = vmatpush1.msra.mxu0 0.0
        %522 = vmatprep.subr.mxu0 0.0
        %523 = vmatpush1.msra.mxu0 %v357
        %524 = vmatprep.subr.mxu0 0.0
        %525 = vmatpush1.msra.mxu0 %v356
        %526 = vmatprep.subr.mxu0 0.0
        %527 = vmatpush1.msra.mxu0 %v355
        %528 = vmatprep.subr.mxu0 0.0
        %529 = vmatpush1.msra.mxu0 %v354
        %530 = vmatprep.subr.mxu0 0.0
        %531 = vmatpush2.msra.mxu0 0.0
        %532 = vmatprep.subr.mxu0 0.0
        %533 = vmatpush2.msra.mxu0 0.0
        %534 = vmatprep.subr.mxu0 0.0
        %535 = vmatpush2.msra.mxu0 0.0
        %536 = vmatprep.subr.mxu0 0.0
        %537 = vmatpush2.msra.mxu0 0.0
        %538 = vmatprep.subr.mxu0 0.0
        %539 = vmatpush2.msra.mxu0 0.0
        %540 = vmatprep.subr.mxu0 0.0
        %541 = vmatpush2.msra.mxu0 0.0
        %542 = vmatprep.subr.mxu0 0.0
        %543 = vmatpush2.msra.mxu0 0.0
        %544 = vmatprep.subr.mxu0 0.0
        %545 = vmatpush2.msra.mxu0 0.0
        %546 = vmatprep.subr.mxu0 0.0
        %547 = vmatpush2.msra.mxu0 0.0
        %548 = vmatprep.subr.mxu0 0.0
        %549 = vmatpush2.msra.mxu0 0.0
        %550 = vmatprep.subr.mxu0 0.0
        %551 = vmatpush2.msra.mxu0 0.0
        %552 = vmatprep.subr.mxu0 0.0
        %553 = vmatpush2.msra.mxu0 0.0
        %554 = vmatprep.subr.mxu0 0.0
        %555 = vmatpush2.msra.mxu0 0.0
        %556 = vmatprep.subr.mxu0 0.0
        %557 = vmatpush2.msra.mxu0 0.0
        %558 = vmatprep.subr.mxu0 0.0
        %559 = vmatpush2.msra.mxu0 0.0
        %560 = vmatprep.subr.mxu0 0.0
        %561 = vmatpush2.msra.mxu0 0.0
        %562 = vmatprep.mubr.f32.mxu0 0.0
        %563 = vmatmul.mubr.f32.gmra.mxu0 %v496
        %v564 = vpop.f32.mrf.mxu0
        %v565 = vadd.f32 0.0, %v564
        %v566 = vpop.f32.mrf.mxu0
        %567 = vdwg.mxu0
        %v568 = vadd.f32 %v492, %v565
        %v569 = vxor.u32 %v568, 2147483648
        %v570 = vmul.f32 %v569, 1.442695
        %v571 = vpow.pop %v570
        %v572 = vadd.f32 %v571, 1.0
        %v573 = vrcp.pop %v572
        %v574 = vmul.f32 1.0, %v573
        %v575 = vtanh.pop %v568
        %v576 = vmul.f32 %v574, %v487
        %578 = vrot.lane.b32.xlu0 %v575, 64
        %v579 = vpop.permute.xlu0 %578
        %v581 = vmul.f32 %v574, %v579
        %583 = vrot.lane.b32.xlu0 %v581, 32
        %v584 = vpop.permute.xlu0 %583
        %v586 = vadd.f32 %v576, %v584
        %v587 = vtanh.pop %v586
        %589 = vrot.lane.b32.xlu0 %v587, 64
        %v590 = vpop.permute.xlu0 %589
        %v592 = vmul.f32 %v574, %v590
        %v593 = vstv %s489
        %vm594 = vcmp.gt.s32.totalorder %v353, %v593
        %v595 = vsel %vm594, 1, 0
        %596 = vset.pattern.permute.xlu0 0
        %597 = vperm.xlu0 %596, %v595
        %v598 = vpop.permute.xlu0 %597
        %vm599 = vcmp.eq.s32.totalorder %v598, 1
        %v600 = vsel %vm599, %v592, 0.0
        %602 = vrot.lane.b32.xlu0 %v600, 32
        %v603 = vpop.permute.xlu0 %602
        %s605 = scalar_lea.vmem %s319, %s490 [#allocation9]
        %606 = vst.msk [vmem:[%s605] sm:$0xf] %vm481, %v603
        %v607 = vsel %vm599, %v592, %v486
        %v608 = vsel %vm599, %v586, %v487
        %s609 = scalar_select %p342, 2, 5
        %s610 = sadd.s32 %s345, %s609
        %s611 = smul.u32 %s609, 4
        %s612 = scalar_lea.vmem %s283, %s611 [#allocation4]
        %v613 = vld [vmem:[%s612] sm:$0xf]
        %615 = vrot.lane.b32.xlu0 %v607, 32
        %v616 = vpop.permute.xlu0 %615
        %v617 = vsel %vm365, %v616, 0
        %619 = vmatprep.subr.mxu0 0.0
        %620 = vmatpush1.msra.mxu0 0.0
        %621 = vmatprep.subr.mxu0 0.0
        %622 = vmatpush1.msra.mxu0 0.0
        %623 = vmatprep.subr.mxu0 0.0
        %624 = vmatpush1.msra.mxu0 0.0
        %625 = vmatprep.subr.mxu0 0.0
        %626 = vmatpush1.msra.mxu0 0.0
        %627 = vmatprep.subr.mxu0 0.0
        %628 = vmatpush1.msra.mxu0 0.0
        %629 = vmatprep.subr.mxu0 0.0
        %630 = vmatpush1.msra.mxu0 0.0
        %631 = vmatprep.subr.mxu0 0.0
        %632 = vmatpush1.msra.mxu0 0.0
        %633 = vmatprep.subr.mxu0 0.0
        %634 = vmatpush1.msra.mxu0 0.0
        %635 = vmatprep.subr.mxu0 0.0
        %636 = vmatpush1.msra.mxu0 0.0
        %637 = vmatprep.subr.mxu0 0.0
        %638 = vmatpush1.msra.mxu0 0.0
        %639 = vmatprep.subr.mxu0 0.0
        %640 = vmatpush1.msra.mxu0 0.0
        %641 = vmatprep.subr.mxu0 0.0
        %642 = vmatpush1.msra.mxu0 0.0
        %643 = vmatprep.subr.mxu0 0.0
        %644 = vmatpush1.msra.mxu0 %v357
        %645 = vmatprep.subr.mxu0 0.0
        %646 = vmatpush1.msra.mxu0 %v356
        %647 = vmatprep.subr.mxu0 0.0
        %648 = vmatpush1.msra.mxu0 %v355
        %649 = vmatprep.subr.mxu0 0.0
        %650 = vmatpush1.msra.mxu0 %v354
        %651 = vmatprep.subr.mxu0 0.0
        %652 = vmatpush2.msra.mxu0 0.0
        %653 = vmatprep.subr.mxu0 0.0
        %654 = vmatpush2.msra.mxu0 0.0
        %655 = vmatprep.subr.mxu0 0.0
        %656 = vmatpush2.msra.mxu0 0.0
        %657 = vmatprep.subr.mxu0 0.0
        %658 = vmatpush2.msra.mxu0 0.0
        %659 = vmatprep.subr.mxu0 0.0
        %660 = vmatpush2.msra.mxu0 0.0
        %661 = vmatprep.subr.mxu0 0.0
        %662 = vmatpush2.msra.mxu0 0.0
        %663 = vmatprep.subr.mxu0 0.0
        %664 = vmatpush2.msra.mxu0 0.0
        %665 = vmatprep.subr.mxu0 0.0
        %666 = vmatpush2.msra.mxu0 0.0
        %667 = vmatprep.subr.mxu0 0.0
        %668 = vmatpush2.msra.mxu0 0.0
        %669 = vmatprep.subr.mxu0 0.0
        %670 = vmatpush2.msra.mxu0 0.0
        %671 = vmatprep.subr.mxu0 0.0
        %672 = vmatpush2.msra.mxu0 0.0
        %673 = vmatprep.subr.mxu0 0.0
        %674 = vmatpush2.msra.mxu0 0.0
        %675 = vmatprep.subr.mxu0 0.0
        %676 = vmatpush2.msra.mxu0 0.0
        %677 = vmatprep.subr.mxu0 0.0
        %678 = vmatpush2.msra.mxu0 0.0
        %679 = vmatprep.subr.mxu0 0.0
        %680 = vmatpush2.msra.mxu0 0.0
        %681 = vmatprep.subr.mxu0 0.0
        %682 = vmatpush2.msra.mxu0 0.0
        %683 = vmatprep.mubr.f32.mxu0 0.0
        %684 = vmatmul.mubr.f32.gmra.mxu0 %v617
        %v685 = vpop.f32.mrf.mxu0
        %v686 = vadd.f32 0.0, %v685
        %v687 = vpop.f32.mrf.mxu0
        %688 = vdwg.mxu0
        %v689 = vadd.f32 %v613, %v686
        %v690 = vxor.u32 %v689, 2147483648
        %v691 = vmul.f32 %v690, 1.442695
        %v692 = vpow.pop %v691
        %v693 = vadd.f32 %v692, 1.0
        %v694 = vrcp.pop %v693
        %v695 = vmul.f32 1.0, %v694
        %v696 = vtanh.pop %v689
        %v697 = vmul.f32 %v695, %v608
        %699 = vrot.lane.b32.xlu0 %v696, 64
        %v700 = vpop.permute.xlu0 %699
        %v702 = vmul.f32 %v695, %v700
        %704 = vrot.lane.b32.xlu0 %v702, 32
        %v705 = vpop.permute.xlu0 %704
        %v707 = vadd.f32 %v697, %v705
        %v708 = vtanh.pop %v707
        %710 = vrot.lane.b32.xlu0 %v708, 64
        %v711 = vpop.permute.xlu0 %710
        %v713 = vmul.f32 %v695, %v711
        %v714 = vstv %s610
        %vm715 = vcmp.gt.s32.totalorder %v353, %v714
        %v716 = vsel %vm715, 1, 0
        %717 = vset.pattern.permute.xlu0 0
        %718 = vperm.xlu0 %717, %v716
        %v719 = vpop.permute.xlu0 %718
        %vm720 = vcmp.eq.s32.totalorder %v719, 1
        %v721 = vsel %vm720, %v713, 0.0
        %723 = vrot.lane.b32.xlu0 %v721, 32
        %v724 = vpop.permute.xlu0 %723
        %s726 = scalar_lea.vmem %s319, %s611 [#allocation9]
        %727 = vst.msk [vmem:[%s726] sm:$0xf] %vm481, %v724
        %v728 = vsel %vm720, %v713, %v607
        %v729 = vsel %vm720, %v707, %v608
        %s730 = scalar_select %p342, 3, 4
        %s731 = sadd.s32 %s345, %s730
        %s732 = smul.u32 %s730, 4
        %s733 = scalar_lea.vmem %s283, %s732 [#allocation4]
        %v734 = vld [vmem:[%s733] sm:$0xf]
        %736 = vrot.lane.b32.xlu0 %v728, 32
        %v737 = vpop.permute.xlu0 %736
        %v738 = vsel %vm365, %v737, 0
        %740 = vmatprep.subr.mxu0 0.0
        %741 = vmatpush1.msra.mxu0 0.0
        %742 = vmatprep.subr.mxu0 0.0
        %743 = vmatpush1.msra.mxu0 0.0
        %744 = vmatprep.subr.mxu0 0.0
        %745 = vmatpush1.msra.mxu0 0.0
        %746 = vmatprep.subr.mxu0 0.0
        %747 = vmatpush1.msra.mxu0 0.0
        %748 = vmatprep.subr.mxu0 0.0
        %749 = vmatpush1.msra.mxu0 0.0
        %750 = vmatprep.subr.mxu0 0.0
        %751 = vmatpush1.msra.mxu0 0.0
        %752 = vmatprep.subr.mxu0 0.0
        %753 = vmatpush1.msra.mxu0 0.0
        %754 = vmatprep.subr.mxu0 0.0
        %755 = vmatpush1.msra.mxu0 0.0
        %756 = vmatprep.subr.mxu0 0.0
        %757 = vmatpush1.msra.mxu0 0.0
        %758 = vmatprep.subr.mxu0 0.0
        %759 = vmatpush1.msra.mxu0 0.0
        %760 = vmatprep.subr.mxu0 0.0
        %761 = vmatpush1.msra.mxu0 0.0
        %762 = vmatprep.subr.mxu0 0.0
        %763 = vmatpush1.msra.mxu0 0.0
        %764 = vmatprep.subr.mxu0 0.0
        %765 = vmatpush1.msra.mxu0 %v357
        %766 = vmatprep.subr.mxu0 0.0
        %767 = vmatpush1.msra.mxu0 %v356
        %768 = vmatprep.subr.mxu0 0.0
        %769 = vmatpush1.msra.mxu0 %v355
        %770 = vmatprep.subr.mxu0 0.0
        %771 = vmatpush1.msra.mxu0 %v354
        %772 = vmatprep.subr.mxu0 0.0
        %773 = vmatpush2.msra.mxu0 0.0
        %774 = vmatprep.subr.mxu0 0.0
        %775 = vmatpush2.msra.mxu0 0.0
        %776 = vmatprep.subr.mxu0 0.0
        %777 = vmatpush2.msra.mxu0 0.0
        %778 = vmatprep.subr.mxu0 0.0
        %779 = vmatpush2.msra.mxu0 0.0
        %780 = vmatprep.subr.mxu0 0.0
        %781 = vmatpush2.msra.mxu0 0.0
        %782 = vmatprep.subr.mxu0 0.0
        %783 = vmatpush2.msra.mxu0 0.0
        %784 = vmatprep.subr.mxu0 0.0
        %785 = vmatpush2.msra.mxu0 0.0
        %786 = vmatprep.subr.mxu0 0.0
        %787 = vmatpush2.msra.mxu0 0.0
        %788 = vmatprep.subr.mxu0 0.0
        %789 = vmatpush2.msra.mxu0 0.0
        %790 = vmatprep.subr.mxu0 0.0
        %791 = vmatpush2.msra.mxu0 0.0
        %792 = vmatprep.subr.mxu0 0.0
        %793 = vmatpush2.msra.mxu0 0.0
        %794 = vmatprep.subr.mxu0 0.0
        %795 = vmatpush2.msra.mxu0 0.0
        %796 = vmatprep.subr.mxu0 0.0
        %797 = vmatpush2.msra.mxu0 0.0
        %798 = vmatprep.subr.mxu0 0.0
        %799 = vmatpush2.msra.mxu0 0.0
        %800 = vmatprep.subr.mxu0 0.0
        %801 = vmatpush2.msra.mxu0 0.0
        %802 = vmatprep.subr.mxu0 0.0
        %803 = vmatpush2.msra.mxu0 0.0
        %804 = vmatprep.mubr.f32.mxu0 0.0
        %805 = vmatmul.mubr.f32.gmra.mxu0 %v738
        %v806 = vpop.f32.mrf.mxu0
        %v807 = vadd.f32 0.0, %v806
        %v808 = vpop.f32.mrf.mxu0
        %809 = vdwg.mxu0
        %v810 = vadd.f32 %v734, %v807
        %v811 = vxor.u32 %v810, 2147483648
        %v812 = vmul.f32 %v811, 1.442695
        %v813 = vpow.pop %v812
        %v814 = vadd.f32 %v813, 1.0
        %v815 = vrcp.pop %v814
        %v816 = vmul.f32 1.0, %v815
        %v817 = vtanh.pop %v810
        %v818 = vmul.f32 %v816, %v729
        %820 = vrot.lane.b32.xlu0 %v817, 64
        %v821 = vpop.permute.xlu0 %820
        %v823 = vmul.f32 %v816, %v821
        %825 = vrot.lane.b32.xlu0 %v823, 32
        %v826 = vpop.permute.xlu0 %825
        %v828 = vadd.f32 %v818, %v826
        %v829 = vtanh.pop %v828
        %831 = vrot.lane.b32.xlu0 %v829, 64
        %v832 = vpop.permute.xlu0 %831
        %v834 = vmul.f32 %v816, %v832
        %v835 = vstv %s731
        %vm836 = vcmp.gt.s32.totalorder %v353, %v835
        %v837 = vsel %vm836, 1, 0
        %838 = vset.pattern.permute.xlu0 0
        %839 = vperm.xlu0 %838, %v837
        %v840 = vpop.permute.xlu0 %839
        %vm841 = vcmp.eq.s32.totalorder %v840, 1
        %v842 = vsel %vm841, %v834, 0.0
        %844 = vrot.lane.b32.xlu0 %v842, 32
        %v845 = vpop.permute.xlu0 %844
        %s847 = scalar_lea.vmem %s319, %s732 [#allocation9]
        %848 = vst.msk [vmem:[%s847] sm:$0xf] %vm481, %v845
        %v849 = vsel %vm841, %v834, %v728
        %v850 = vsel %vm841, %v828, %v729
        %s851 = scalar_select %p342, 4, 3
        %s852 = sadd.s32 %s345, %s851
        %s853 = smul.u32 %s851, 4
        %s854 = scalar_lea.vmem %s283, %s853 [#allocation4]
        %v855 = vld [vmem:[%s854] sm:$0xf]
        %857 = vrot.lane.b32.xlu0 %v849, 32
        %v858 = vpop.permute.xlu0 %857
        %v859 = vsel %vm365, %v858, 0
        %861 = vmatprep.subr.mxu0 0.0
        %862 = vmatpush1.msra.mxu0 0.0
        %863 = vmatprep.subr.mxu0 0.0
        %864 = vmatpush1.msra.mxu0 0.0
        %865 = vmatprep.subr.mxu0 0.0
        %866 = vmatpush1.msra.mxu0 0.0
        %867 = vmatprep.subr.mxu0 0.0
        %868 = vmatpush1.msra.mxu0 0.0
        %869 = vmatprep.subr.mxu0 0.0
        %870 = vmatpush1.msra.mxu0 0.0
        %871 = vmatprep.subr.mxu0 0.0
        %872 = vmatpush1.msra.mxu0 0.0
        %873 = vmatprep.subr.mxu0 0.0
        %874 = vmatpush1.msra.mxu0 0.0
        %875 = vmatprep.subr.mxu0 0.0
        %876 = vmatpush1.msra.mxu0 0.0
        %877 = vmatprep.subr.mxu0 0.0
        %878 = vmatpush1.msra.mxu0 0.0
        %879 = vmatprep.subr.mxu0 0.0
        %880 = vmatpush1.msra.mxu0 0.0
        %881 = vmatprep.subr.mxu0 0.0
        %882 = vmatpush1.msra.mxu0 0.0
        %883 = vmatprep.subr.mxu0 0.0
        %884 = vmatpush1.msra.mxu0 0.0
        %885 = vmatprep.subr.mxu0 0.0
        %886 = vmatpush1.msra.mxu0 %v357
        %887 = vmatprep.subr.mxu0 0.0
        %888 = vmatpush1.msra.mxu0 %v356
        %889 = vmatprep.subr.mxu0 0.0
        %890 = vmatpush1.msra.mxu0 %v355
        %891 = vmatprep.subr.mxu0 0.0
        %892 = vmatpush1.msra.mxu0 %v354
        %893 = vmatprep.subr.mxu0 0.0
        %894 = vmatpush2.msra.mxu0 0.0
        %895 = vmatprep.subr.mxu0 0.0
        %896 = vmatpush2.msra.mxu0 0.0
        %897 = vmatprep.subr.mxu0 0.0
        %898 = vmatpush2.msra.mxu0 0.0
        %899 = vmatprep.subr.mxu0 0.0
        %900 = vmatpush2.msra.mxu0 0.0
        %901 = vmatprep.subr.mxu0 0.0
        %902 = vmatpush2.msra.mxu0 0.0
        %903 = vmatprep.subr.mxu0 0.0
        %904 = vmatpush2.msra.mxu0 0.0
        %905 = vmatprep.subr.mxu0 0.0
        %906 = vmatpush2.msra.mxu0 0.0
        %907 = vmatprep.subr.mxu0 0.0
        %908 = vmatpush2.msra.mxu0 0.0
        %909 = vmatprep.subr.mxu0 0.0
        %910 = vmatpush2.msra.mxu0 0.0
        %911 = vmatprep.subr.mxu0 0.0
        %912 = vmatpush2.msra.mxu0 0.0
        %913 = vmatprep.subr.mxu0 0.0
        %914 = vmatpush2.msra.mxu0 0.0
        %915 = vmatprep.subr.mxu0 0.0
        %916 = vmatpush2.msra.mxu0 0.0
        %917 = vmatprep.subr.mxu0 0.0
        %918 = vmatpush2.msra.mxu0 0.0
        %919 = vmatprep.subr.mxu0 0.0
        %920 = vmatpush2.msra.mxu0 0.0
        %921 = vmatprep.subr.mxu0 0.0
        %922 = vmatpush2.msra.mxu0 0.0
        %923 = vmatprep.subr.mxu0 0.0
        %924 = vmatpush2.msra.mxu0 0.0
        %925 = vmatprep.mubr.f32.mxu0 0.0
        %926 = vmatmul.mubr.f32.gmra.mxu0 %v859
        %v927 = vpop.f32.mrf.mxu0
        %v928 = vadd.f32 0.0, %v927
        %v929 = vpop.f32.mrf.mxu0
        %930 = vdwg.mxu0
        %v931 = vadd.f32 %v855, %v928
        %v932 = vxor.u32 %v931, 2147483648
        %v933 = vmul.f32 %v932, 1.442695
        %v934 = vpow.pop %v933
        %v935 = vadd.f32 %v934, 1.0
        %v936 = vrcp.pop %v935
        %v937 = vmul.f32 1.0, %v936
        %v938 = vtanh.pop %v931
        %v939 = vmul.f32 %v937, %v850
        %941 = vrot.lane.b32.xlu0 %v938, 64
        %v942 = vpop.permute.xlu0 %941
        %v944 = vmul.f32 %v937, %v942
        %946 = vrot.lane.b32.xlu0 %v944, 32
        %v947 = vpop.permute.xlu0 %946
        %v949 = vadd.f32 %v939, %v947
        %v950 = vtanh.pop %v949
        %952 = vrot.lane.b32.xlu0 %v950, 64
        %v953 = vpop.permute.xlu0 %952
        %v955 = vmul.f32 %v937, %v953
        %v956 = vstv %s852
        %vm957 = vcmp.gt.s32.totalorder %v353, %v956
        %v958 = vsel %vm957, 1, 0
        %959 = vset.pattern.permute.xlu0 0
        %960 = vperm.xlu0 %959, %v958
        %v961 = vpop.permute.xlu0 %960
        %vm962 = vcmp.eq.s32.totalorder %v961, 1
        %v963 = vsel %vm962, %v955, 0.0
        %965 = vrot.lane.b32.xlu0 %v963, 32
        %v966 = vpop.permute.xlu0 %965
        %s968 = scalar_lea.vmem %s319, %s853 [#allocation9]
        %969 = vst.msk [vmem:[%s968] sm:$0xf] %vm481, %v966
        %v970 = vsel %vm962, %v955, %v849
        %v971 = vsel %vm962, %v949, %v850
        %s972 = scalar_select %p342, 5, 2
        %s973 = sadd.s32 %s345, %s972
        %s974 = smul.u32 %s972, 4
        %s975 = scalar_lea.vmem %s283, %s974 [#allocation4]
        %v976 = vld [vmem:[%s975] sm:$0xf]
        %978 = vrot.lane.b32.xlu0 %v970, 32
        %v979 = vpop.permute.xlu0 %978
        %v980 = vsel %vm365, %v979, 0
        %982 = vmatprep.subr.mxu0 0.0
        %983 = vmatpush1.msra.mxu0 0.0
        %984 = vmatprep.subr.mxu0 0.0
        %985 = vmatpush1.msra.mxu0 0.0
        %986 = vmatprep.subr.mxu0 0.0
        %987 = vmatpush1.msra.mxu0 0.0
        %988 = vmatprep.subr.mxu0 0.0
        %989 = vmatpush1.msra.mxu0 0.0
        %990 = vmatprep.subr.mxu0 0.0
        %991 = vmatpush1.msra.mxu0 0.0
        %992 = vmatprep.subr.mxu0 0.0
        %993 = vmatpush1.msra.mxu0 0.0
        %994 = vmatprep.subr.mxu0 0.0
        %995 = vmatpush1.msra.mxu0 0.0
        %996 = vmatprep.subr.mxu0 0.0
        %997 = vmatpush1.msra.mxu0 0.0
        %998 = vmatprep.subr.mxu0 0.0
        %999 = vmatpush1.msra.mxu0 0.0
        %1000 = vmatprep.subr.mxu0 0.0
        %1001 = vmatpush1.msra.mxu0 0.0
        %1002 = vmatprep.subr.mxu0 0.0
        %1003 = vmatpush1.msra.mxu0 0.0
        %1004 = vmatprep.subr.mxu0 0.0
        %1005 = vmatpush1.msra.mxu0 0.0
        %1006 = vmatprep.subr.mxu0 0.0
        %1007 = vmatpush1.msra.mxu0 %v357
        %1008 = vmatprep.subr.mxu0 0.0
        %1009 = vmatpush1.msra.mxu0 %v356
        %1010 = vmatprep.subr.mxu0 0.0
        %1011 = vmatpush1.msra.mxu0 %v355
        %1012 = vmatprep.subr.mxu0 0.0
        %1013 = vmatpush1.msra.mxu0 %v354
        %1014 = vmatprep.subr.mxu0 0.0
        %1015 = vmatpush2.msra.mxu0 0.0
        %1016 = vmatprep.subr.mxu0 0.0
        %1017 = vmatpush2.msra.mxu0 0.0
        %1018 = vmatprep.subr.mxu0 0.0
        %1019 = vmatpush2.msra.mxu0 0.0
        %1020 = vmatprep.subr.mxu0 0.0
        %1021 = vmatpush2.msra.mxu0 0.0
        %1022 = vmatprep.subr.mxu0 0.0
        %1023 = vmatpush2.msra.mxu0 0.0
        %1024 = vmatprep.subr.mxu0 0.0
        %1025 = vmatpush2.msra.mxu0 0.0
        %1026 = vmatprep.subr.mxu0 0.0
        %1027 = vmatpush2.msra.mxu0 0.0
        %1028 = vmatprep.subr.mxu0 0.0
        %1029 = vmatpush2.msra.mxu0 0.0
        %1030 = vmatprep.subr.mxu0 0.0
        %1031 = vmatpush2.msra.mxu0 0.0
        %1032 = vmatprep.subr.mxu0 0.0
        %1033 = vmatpush2.msra.mxu0 0.0
        %1034 = vmatprep.subr.mxu0 0.0
        %1035 = vmatpush2.msra.mxu0 0.0
        %1036 = vmatprep.subr.mxu0 0.0
        %1037 = vmatpush2.msra.mxu0 0.0
        %1038 = vmatprep.subr.mxu0 0.0
        %1039 = vmatpush2.msra.mxu0 0.0
        %1040 = vmatprep.subr.mxu0 0.0
        %1041 = vmatpush2.msra.mxu0 0.0
        %1042 = vmatprep.subr.mxu0 0.0
        %1043 = vmatpush2.msra.mxu0 0.0
        %1044 = vmatprep.subr.mxu0 0.0
        %1045 = vmatpush2.msra.mxu0 0.0
        %1046 = vmatprep.mubr.f32.mxu0 0.0
        %1047 = vmatmul.mubr.f32.gmra.mxu0 %v980
        %v1048 = vpop.f32.mrf.mxu0
        %v1049 = vadd.f32 0.0, %v1048
        %v1050 = vpop.f32.mrf.mxu0
        %1051 = vdwg.mxu0
        %v1052 = vadd.f32 %v976, %v1049
        %v1053 = vxor.u32 %v1052, 2147483648
        %v1054 = vmul.f32 %v1053, 1.442695
        %v1055 = vpow.pop %v1054
        %v1056 = vadd.f32 %v1055, 1.0
        %v1057 = vrcp.pop %v1056
        %v1058 = vmul.f32 1.0, %v1057
        %v1059 = vtanh.pop %v1052
        %v1060 = vmul.f32 %v1058, %v971
        %1062 = vrot.lane.b32.xlu0 %v1059, 64
        %v1063 = vpop.permute.xlu0 %1062
        %v1065 = vmul.f32 %v1058, %v1063
        %1067 = vrot.lane.b32.xlu0 %v1065, 32
        %v1068 = vpop.permute.xlu0 %1067
        %v1070 = vadd.f32 %v1060, %v1068
        %v1071 = vtanh.pop %v1070
        %1073 = vrot.lane.b32.xlu0 %v1071, 64
        %v1074 = vpop.permute.xlu0 %1073
        %v1076 = vmul.f32 %v1058, %v1074
        %v1077 = vstv %s973
        %vm1078 = vcmp.gt.s32.totalorder %v353, %v1077
        %v1079 = vsel %vm1078, 1, 0
        %1080 = vset.pattern.permute.xlu0 0
        %1081 = vperm.xlu0 %1080, %v1079
        %v1082 = vpop.permute.xlu0 %1081
        %vm1083 = vcmp.eq.s32.totalorder %v1082, 1
        %v1084 = vsel %vm1083, %v1076, 0.0
        %1086 = vrot.lane.b32.xlu0 %v1084, 32
        %v1087 = vpop.permute.xlu0 %1086
        %s1089 = scalar_lea.vmem %s319, %s974 [#allocation9]
        %1090 = vst.msk [vmem:[%s1089] sm:$0xf] %vm481, %v1087
        %v1091 = vsel %vm1083, %v1076, %v970
        %v1092 = vsel %vm1083, %v1070, %v971
        %s1093 = scalar_select %p342, 6, 1
        %s1094 = sadd.s32 %s345, %s1093
        %s1095 = smul.u32 %s1093, 4
        %s1096 = scalar_lea.vmem %s283, %s1095 [#allocation4]
        %v1097 = vld [vmem:[%s1096] sm:$0xf]
        %1099 = vrot.lane.b32.xlu0 %v1091, 32
        %v1100 = vpop.permute.xlu0 %1099
        %v1101 = vsel %vm365, %v1100, 0
        %1103 = vmatprep.subr.mxu0 0.0
        %1104 = vmatpush1.msra.mxu0 0.0
        %1105 = vmatprep.subr.mxu0 0.0
        %1106 = vmatpush1.msra.mxu0 0.0
        %1107 = vmatprep.subr.mxu0 0.0
        %1108 = vmatpush1.msra.mxu0 0.0
        %1109 = vmatprep.subr.mxu0 0.0
        %1110 = vmatpush1.msra.mxu0 0.0
        %1111 = vmatprep.subr.mxu0 0.0
        %1112 = vmatpush1.msra.mxu0 0.0
        %1113 = vmatprep.subr.mxu0 0.0
        %1114 = vmatpush1.msra.mxu0 0.0
        %1115 = vmatprep.subr.mxu0 0.0
        %1116 = vmatpush1.msra.mxu0 0.0
        %1117 = vmatprep.subr.mxu0 0.0
        %1118 = vmatpush1.msra.mxu0 0.0
        %1119 = vmatprep.subr.mxu0 0.0
        %1120 = vmatpush1.msra.mxu0 0.0
        %1121 = vmatprep.subr.mxu0 0.0
        %1122 = vmatpush1.msra.mxu0 0.0
        %1123 = vmatprep.subr.mxu0 0.0
        %1124 = vmatpush1.msra.mxu0 0.0
        %1125 = vmatprep.subr.mxu0 0.0
        %1126 = vmatpush1.msra.mxu0 0.0
        %1127 = vmatprep.subr.mxu0 0.0
        %1128 = vmatpush1.msra.mxu0 %v357
        %1129 = vmatprep.subr.mxu0 0.0
        %1130 = vmatpush1.msra.mxu0 %v356
        %1131 = vmatprep.subr.mxu0 0.0
        %1132 = vmatpush1.msra.mxu0 %v355
        %1133 = vmatprep.subr.mxu0 0.0
        %1134 = vmatpush1.msra.mxu0 %v354
        %1135 = vmatprep.subr.mxu0 0.0
        %1136 = vmatpush2.msra.mxu0 0.0
        %1137 = vmatprep.subr.mxu0 0.0
        %1138 = vmatpush2.msra.mxu0 0.0
        %1139 = vmatprep.subr.mxu0 0.0
        %1140 = vmatpush2.msra.mxu0 0.0
        %1141 = vmatprep.subr.mxu0 0.0
        %1142 = vmatpush2.msra.mxu0 0.0
        %1143 = vmatprep.subr.mxu0 0.0
        %1144 = vmatpush2.msra.mxu0 0.0
        %1145 = vmatprep.subr.mxu0 0.0
        %1146 = vmatpush2.msra.mxu0 0.0
        %1147 = vmatprep.subr.mxu0 0.0
        %1148 = vmatpush2.msra.mxu0 0.0
        %1149 = vmatprep.subr.mxu0 0.0
        %1150 = vmatpush2.msra.mxu0 0.0
        %1151 = vmatprep.subr.mxu0 0.0
        %1152 = vmatpush2.msra.mxu0 0.0
        %1153 = vmatprep.subr.mxu0 0.0
        %1154 = vmatpush2.msra.mxu0 0.0
        %1155 = vmatprep.subr.mxu0 0.0
        %1156 = vmatpush2.msra.mxu0 0.0
        %1157 = vmatprep.subr.mxu0 0.0
        %1158 = vmatpush2.msra.mxu0 0.0
        %1159 = vmatprep.subr.mxu0 0.0
        %1160 = vmatpush2.msra.mxu0 0.0
        %1161 = vmatprep.subr.mxu0 0.0
        %1162 = vmatpush2.msra.mxu0 0.0
        %1163 = vmatprep.subr.mxu0 0.0
        %1164 = vmatpush2.msra.mxu0 0.0
        %1165 = vmatprep.subr.mxu0 0.0
        %1166 = vmatpush2.msra.mxu0 0.0
        %1167 = vmatprep.mubr.f32.mxu0 0.0
        %1168 = vmatmul.mubr.f32.gmra.mxu0 %v1101
        %v1169 = vpop.f32.mrf.mxu0
        %v1170 = vadd.f32 0.0, %v1169
        %v1171 = vpop.f32.mrf.mxu0
        %1172 = vdwg.mxu0
        %v1173 = vadd.f32 %v1097, %v1170
        %v1174 = vxor.u32 %v1173, 2147483648
        %v1175 = vmul.f32 %v1174, 1.442695
        %v1176 = vpow.pop %v1175
        %v1177 = vadd.f32 %v1176, 1.0
        %v1178 = vrcp.pop %v1177
        %v1179 = vmul.f32 1.0, %v1178
        %v1180 = vtanh.pop %v1173
        %v1181 = vmul.f32 %v1179, %v1092
        %1183 = vrot.lane.b32.xlu0 %v1180, 64
        %v1184 = vpop.permute.xlu0 %1183
        %v1186 = vmul.f32 %v1179, %v1184
        %1188 = vrot.lane.b32.xlu0 %v1186, 32
        %v1189 = vpop.permute.xlu0 %1188
        %v1191 = vadd.f32 %v1181, %v1189
        %v1192 = vtanh.pop %v1191
        %1194 = vrot.lane.b32.xlu0 %v1192, 64
        %v1195 = vpop.permute.xlu0 %1194
        %v1197 = vmul.f32 %v1179, %v1195
        %v1198 = vstv %s1094
        %vm1199 = vcmp.gt.s32.totalorder %v353, %v1198
        %v1200 = vsel %vm1199, 1, 0
        %1201 = vset.pattern.permute.xlu0 0
        %1202 = vperm.xlu0 %1201, %v1200
        %v1203 = vpop.permute.xlu0 %1202
        %vm1204 = vcmp.eq.s32.totalorder %v1203, 1
        %v1205 = vsel %vm1204, %v1197, 0.0
        %1207 = vrot.lane.b32.xlu0 %v1205, 32
        %v1208 = vpop.permute.xlu0 %1207
        %s1210 = scalar_lea.vmem %s319, %s1095 [#allocation9]
        %1211 = vst.msk [vmem:[%s1210] sm:$0xf] %vm481, %v1208
        %v1212 = vsel %vm1204, %v1197, %v1091
        %v1213 = vsel %vm1204, %v1191, %v1092
        %s1214 = scalar_select %p342, 7, 0
        %s1215 = sadd.s32 %s345, %s1214
        %s1216 = smul.u32 %s1214, 4
        %s1217 = scalar_lea.vmem %s283, %s1216 [#allocation4]
        %v1218 = vld [vmem:[%s1217] sm:$0xf]
        %1220 = vrot.lane.b32.xlu0 %v1212, 32
        %v1221 = vpop.permute.xlu0 %1220
        %v1222 = vsel %vm365, %v1221, 0
        %1224 = vmatprep.subr.mxu0 0.0
        %1225 = vmatpush1.msra.mxu0 0.0
        %1226 = vmatprep.subr.mxu0 0.0
        %1227 = vmatpush1.msra.mxu0 0.0
        %1228 = vmatprep.subr.mxu0 0.0
        %1229 = vmatpush1.msra.mxu0 0.0
        %1230 = vmatprep.subr.mxu0 0.0
        %1231 = vmatpush1.msra.mxu0 0.0
        %1232 = vmatprep.subr.mxu0 0.0
        %1233 = vmatpush1.msra.mxu0 0.0
        %1234 = vmatprep.subr.mxu0 0.0
        %1235 = vmatpush1.msra.mxu0 0.0
        %1236 = vmatprep.subr.mxu0 0.0
        %1237 = vmatpush1.msra.mxu0 0.0
        %1238 = vmatprep.subr.mxu0 0.0
        %1239 = vmatpush1.msra.mxu0 0.0
        %1240 = vmatprep.subr.mxu0 0.0
        %1241 = vmatpush1.msra.mxu0 0.0
        %1242 = vmatprep.subr.mxu0 0.0
        %1243 = vmatpush1.msra.mxu0 0.0
        %1244 = vmatprep.subr.mxu0 0.0
        %1245 = vmatpush1.msra.mxu0 0.0
        %1246 = vmatprep.subr.mxu0 0.0
        %1247 = vmatpush1.msra.mxu0 0.0
        %1248 = vmatprep.subr.mxu0 0.0
        %1249 = vmatpush1.msra.mxu0 %v357
        %1250 = vmatprep.subr.mxu0 0.0
        %1251 = vmatpush1.msra.mxu0 %v356
        %1252 = vmatprep.subr.mxu0 0.0
        %1253 = vmatpush1.msra.mxu0 %v355
        %1254 = vmatprep.subr.mxu0 0.0
        %1255 = vmatpush1.msra.mxu0 %v354
        %1256 = vmatprep.subr.mxu0 0.0
        %1257 = vmatpush2.msra.mxu0 0.0
        %1258 = vmatprep.subr.mxu0 0.0
        %1259 = vmatpush2.msra.mxu0 0.0
        %1260 = vmatprep.subr.mxu0 0.0
        %1261 = vmatpush2.msra.mxu0 0.0
        %1262 = vmatprep.subr.mxu0 0.0
        %1263 = vmatpush2.msra.mxu0 0.0
        %1264 = vmatprep.subr.mxu0 0.0
        %1265 = vmatpush2.msra.mxu0 0.0
        %1266 = vmatprep.subr.mxu0 0.0
        %1267 = vmatpush2.msra.mxu0 0.0
        %1268 = vmatprep.subr.mxu0 0.0
        %1269 = vmatpush2.msra.mxu0 0.0
        %1270 = vmatprep.subr.mxu0 0.0
        %1271 = vmatpush2.msra.mxu0 0.0
        %1272 = vmatprep.subr.mxu0 0.0
        %1273 = vmatpush2.msra.mxu0 0.0
        %1274 = vmatprep.subr.mxu0 0.0
        %1275 = vmatpush2.msra.mxu0 0.0
        %1276 = vmatprep.subr.mxu0 0.0
        %1277 = vmatpush2.msra.mxu0 0.0
        %1278 = vmatprep.subr.mxu0 0.0
        %1279 = vmatpush2.msra.mxu0 0.0
        %1280 = vmatprep.subr.mxu0 0.0
        %1281 = vmatpush2.msra.mxu0 0.0
        %1282 = vmatprep.subr.mxu0 0.0
        %1283 = vmatpush2.msra.mxu0 0.0
        %1284 = vmatprep.subr.mxu0 0.0
        %1285 = vmatpush2.msra.mxu0 0.0
        %1286 = vmatprep.subr.mxu0 0.0
        %1287 = vmatpush2.msra.mxu0 0.0
        %1288 = vmatprep.mubr.f32.mxu0 0.0
        %1289 = vmatmul.mubr.f32.gmra.mxu0 %v1222
        %v1290 = vpop.f32.mrf.mxu0
        %v1291 = vadd.f32 0.0, %v1290
        %v1292 = vpop.f32.mrf.mxu0
        %1293 = vdwg.mxu0
        %v1294 = vadd.f32 %v1218, %v1291
        %v1295 = vxor.u32 %v1294, 2147483648
        %v1296 = vmul.f32 %v1295, 1.442695
        %v1297 = vpow.pop %v1296
        %v1298 = vadd.f32 %v1297, 1.0
        %v1299 = vrcp.pop %v1298
        %v1300 = vmul.f32 1.0, %v1299
        %v1301 = vtanh.pop %v1294
        %v1302 = vmul.f32 %v1300, %v1213
        %1304 = vrot.lane.b32.xlu0 %v1301, 64
        %v1305 = vpop.permute.xlu0 %1304
        %v1307 = vmul.f32 %v1300, %v1305
        %1309 = vrot.lane.b32.xlu0 %v1307, 32
        %v1310 = vpop.permute.xlu0 %1309
        %v1312 = vadd.f32 %v1302, %v1310
        %v1313 = vtanh.pop %v1312
        %1315 = vrot.lane.b32.xlu0 %v1313, 64
        %v1316 = vpop.permute.xlu0 %1315
        %v1318 = vmul.f32 %v1300, %v1316
        %v1319 = vstv %s1215
        %vm1320 = vcmp.gt.s32.totalorder %v353, %v1319
        %v1321 = vsel %vm1320, 1, 0
        %1322 = vset.pattern.permute.xlu0 0
        %1323 = vperm.xlu0 %1322, %v1321
        %v1324 = vpop.permute.xlu0 %1323
        %vm1325 = vcmp.eq.s32.totalorder %v1324, 1
        %v1326 = vsel %vm1325, %v1318, 0.0
        %1328 = vrot.lane.b32.xlu0 %v1326, 32
        %v1329 = vpop.permute.xlu0 %1328
        %s1331 = scalar_lea.vmem %s319, %s1216 [#allocation9]
        %1332 = vst.msk [vmem:[%s1331] sm:$0xf] %vm481, %v1329
        %v1333 = vsel %vm1325, %v1318, %v1212
        %v1334 = vsel %vm1325, %v1312, %v1213
        %1336 = vrot.lane.b32.xlu0 %v1333, 32
        %v1337 = vpop.permute.xlu0 %1336
        %1339 = vst.msk [vmem:[#allocation2] sm:$0xf] %vm481, %v1337
        %1341 = vrot.lane.b32.xlu0 %v1334, 96
        %v1342 = vpop.permute.xlu0 %1341
        %1344 = vst.msk [vmem:[#allocation3] sm:$0xf] %vm481, %v1342
        %p1345 = scmp.eq.s32.totalorder %s34, 1
        // Predicated region
        $region45: #{tpu_custom_call.1} parent=31 // pred_check
          %p1346 = pneg %p1345
        $region46: #{tpu_custom_call.1} parent=31 // pred_check_branch
          %1348 = sbr.rel (%p1346) target = $region48
        $region47: #{tpu_custom_call.1} parent=31 // pred_region
          %1349 = vst.msk [vmem:[%s326] sm:$0xf] %vm481, %v1337
          %1350 = vst.msk [vmem:[%s333] sm:$0xf] %vm481, %v1342
        $region48: #{tpu_custom_call.1} parent=31 // pred_fallthru
          _
        %s1351 = sand.u32 %s138, 1
        %s1352 = scalar_lea.sflag [#allocation6], %s1351
        %s1353 = sand.u32 %s138, 1
        %s1354 = smul.addr %s1353, 32
        %s1355 = scalar_lea.vmem [#allocation9], %s1354
        %s1356 = sand.u32 %s29, 1
        %s1357 = scalar_lea.sflag [#allocation11], %s1356
        %s1358 = sand.u32 %s164, 1
        %s1359 = smul.addr %s1358, 4
        %s1360 = scalar_lea.vmem [#allocation10], %s1359
        %s1361 = sand.u32 %s29, 1
        %s1362 = scalar_lea.sflag [#allocation11], %s1361
        %s1363 = sand.u32 %s190, 1
        %s1364 = smul.addr %s1363, 4
        %s1365 = scalar_lea.vmem [#allocation12], %s1364
        // Predicated region
        $region49: #{tpu_custom_call.1} parent=31 // pred_check
          %p1366 = pneg %p148
        $region50: #{tpu_custom_call.1} parent=31 // pred_check_branch
          %1368 = sbr.rel (%p1366) target = $region52
        $region51: #{tpu_custom_call.1} parent=31 // pred_region
          %p1369 = scmp.eq.s32.totalorder %s33, 0
          %s1370 = ssub.s32 1, %s34
          %s1371 = scalar_select %p1369, %s34, %s1370
          %s1372 = smul.u32 8, %s1371
          %s1374 = ssub.s32 512, 512
          %1375 = vsyncadd %s1352, %s1374
          %s1376 = smul.addr %s33, 16
          %s1377 = sadd.s32 %s1372, %s1376
          %s1378 = smul.addr %s1377, 64
          %s1379 = scalar_lea.hbm %s3, %s1378
          %s1380 = sshll.u32 %s1355, 4
          %s1381 = int_to_ptr.vmem [resolvable:$true] %s1380
          %1386 = dma.vmem_to_hbm [thread:$0]  %s1381, 512, %s1379, %s1352, 64, 64, 4
        $region52: #{tpu_custom_call.1} parent=31 // pred_fallthru
          _
        // Predicated region
        $region53: #{tpu_custom_call.1} parent=31 // pred_check
          %p1387 = pneg %p174
        $region54: #{tpu_custom_call.1} parent=31 // pred_check_branch
          %1389 = sbr.rel (%p1387) target = $region56
        $region55: #{tpu_custom_call.1} parent=31 // pred_region
          %s1391 = ssub.s32 64, 64
          %1392 = vsyncadd %s1357, %s1391
          %s1393 = smul.addr %s33, 64
          %s1394 = scalar_lea.hbm %s4, %s1393
          %s1396 = sshll.u32 %s1360, 4
          %s1397 = int_to_ptr.vmem [resolvable:$true] %s1396
          %1399 = dma.vmem_to_hbm [thread:$0]  %s1397, 64, %s1394, %s1357
        $region56: #{tpu_custom_call.1} parent=31 // pred_fallthru
          _
        // Predicated region
        $region57: #{tpu_custom_call.1} parent=31 // pred_check
          %p1400 = pneg %p200
        $region58: #{tpu_custom_call.1} parent=31 // pred_check_branch
          %1402 = sbr.rel (%p1400) target = $region60
        $region59: #{tpu_custom_call.1} parent=31 // pred_region
          %s1404 = ssub.s32 64, 64
          %1405 = vsyncadd %s1362, %s1404
          %s1406 = smul.addr %s33, 64
          %s1407 = scalar_lea.hbm %s5, %s1406
          %s1409 = sshll.u32 %s1365, 4
          %s1410 = int_to_ptr.vmem [resolvable:$true] %s1409
          %1412 = dma.vmem_to_hbm [thread:$0]  %s1410, 64, %s1407, %s1362
        $region60: #{tpu_custom_call.1} parent=31 // pred_fallthru
          _
      $region32: #{tpu_custom_call.1} parent=5 // pred_fallthru
        _
      %p1413 = scmp.le.s32.totalorder 2, %s24
      // Predicated region
      $region61: #{tpu_custom_call.1} parent=5 // pred_check
        %p1414 = pneg %p1413
      $region62: #{tpu_custom_call.1} parent=5 // pred_check_branch
        %1416 = sbr.rel (%p1414) target = $region64
      $region63: #{tpu_custom_call.1} parent=5 // pred_region
        %s1417 = ssub.s32 %s24, 2
        // Predicated region
        $region65: #{tpu_custom_call.1} parent=63 // pred_check
          %p1418 = pneg %p154
        $region66: #{tpu_custom_call.1} parent=63 // pred_check_branch
          %1420 = sbr.rel (%p1418) target = $region68
        $region67: #{tpu_custom_call.1} parent=63 // pred_region
          %s1421 = sand.u32 %s139, 1
          %s1422 = scalar_lea.sflag [#allocation6], %s1421
          %s1423 = sand.u32 %s139, 1
          %s1424 = smul.addr %s1423, 32
          %s1425 = scalar_lea.vmem [#allocation9], %s1424
          %1426 = dma.done %s1422, 512
        $region68: #{tpu_custom_call.1} parent=63 // pred_fallthru
          _
        // Predicated region
        $region69: #{tpu_custom_call.1} parent=63 // pred_check
          %p1427 = pneg %p180
        $region70: #{tpu_custom_call.1} parent=63 // pred_check_branch
          %1429 = sbr.rel (%p1427) target = $region72
        $region71: #{tpu_custom_call.1} parent=63 // pred_region
          %s1430 = sand.u32 %s30, 1
          %s1431 = scalar_lea.sflag [#allocation11], %s1430
          %s1432 = sand.u32 %s165, 1
          %s1433 = smul.addr %s1432, 4
          %s1434 = scalar_lea.vmem [#allocation10], %s1433
          %1435 = dma.done %s1431, 64
        $region72: #{tpu_custom_call.1} parent=63 // pred_fallthru
          _
        // Predicated region
        $region73: #{tpu_custom_call.1} parent=63 // pred_check
          %p1436 = pneg %p206
        $region74: #{tpu_custom_call.1} parent=63 // pred_check_branch
          %1438 = sbr.rel (%p1436) target = $region76
        $region75: #{tpu_custom_call.1} parent=63 // pred_region
          %s1439 = sand.u32 %s30, 1
          %s1440 = scalar_lea.sflag [#allocation11], %s1439
          %s1441 = sand.u32 %s191, 1
          %s1442 = smul.addr %s1441, 4
          %s1443 = scalar_lea.vmem [#allocation12], %s1442
          %1444 = dma.done %s1440, 64
        $region76: #{tpu_custom_call.1} parent=63 // pred_fallthru
          _
      $region64: #{tpu_custom_call.1} parent=5 // pred_fallthru
        _
    $region6: #{tpu_custom_call.1} parent=1 // loop_footer
      %s28 = sadd.s32 1, %s24
    $region7: #{tpu_custom_call.1} parent=1 // loop_footer_branch
      %23 = sbr.rel target = $region3
    $region8: #{tpu_custom_call.1} parent=1 // loop_exit
      _
    %1445 = vsyncpa [#allocation5], 1
    %s1446 = scalar_lea.sflag [#allocation5], 1
    %1447 = vsyncpa %s1446, 1
    %1448 = vsyncpa [#allocation8], 1
    %s1449 = scalar_lea.sflag [#allocation8], 1
    %1450 = vsyncpa %s1449, 1
    %1451 = vsyncpa [#allocation6], 1
    %s1452 = scalar_lea.sflag [#allocation6], 1
    %1453 = vsyncpa %s1452, 1
    %1454 = vsyncpa [#allocation11], 1
    %s1455 = scalar_lea.sflag [#allocation11], 1
    %1456 = vsyncpa %s1455, 1

</llo_original>
